<compile_context>
chip_gen: v5e
topology: v5e:2x2
jax: 0.10.0
libtpu: 0.0.40
codegen_flags: <defaults>
</compile_context>

<pallas_src>
import functools

import jax
import jax.numpy as jnp
from jax import lax
from jax.experimental import pallas as pl
from jax.experimental.pallas import tpu as pltpu


def _residual_stack_kernel(x_ref, w3_ref, w1_ref, mask_ref, out_ref, kbuf_ref,
                           *, L, C, W):
    """One grid step processes Bt images in CHW-flat (lane-dense) layout.

    x_ref    : [C, N]          f32   N = Bt*H*W, batch/spatial on lanes
    w3_ref   : [L, Cmid, 9*C]  bf16  3x3 conv weights as im2col matrices
    w1_ref   : [L, C, Cmid]    bf16  1x1 conv weights ([out, in])
    mask_ref : [9, 1, N]       f32   per-tap 'same'-padding validity mask
    out_ref  : [C, N]          f32
    kbuf_ref : [9*C, N]        bf16  VMEM im2col buffer (K on sublanes)
    """
    n_lanes = x_ref.shape[1]
    cur = x_ref[...]                                  # residual path stays f32

    for l in range(L):
        a = jnp.maximum(cur, 0.0)                     # ReLU, [C, N] f32

        # Build the im2col RHS: 9 masked lane-rolls (XLU) -> aligned bf16 stores.
        for ky in range(3):
            for kx in range(3):
                t = ky * 3 + kx
                s = (ky - 1) * W + (kx - 1)           # flat spatial shift of tap
                if s == 0:
                    shifted = a
                else:
                    shifted = pltpu.roll(a, (-s) % n_lanes, axis=1)
                m = mask_ref[t]                        # [1, N], zero where padded
                kbuf_ref[t * C:(t + 1) * C, :] = (shifted * m).astype(jnp.bfloat16)

        # 3x3 conv: ONE MXU matmul per layer, K = 9*C, lane-dense [Cmid, N] result.
        mid = jnp.dot(w3_ref[l], kbuf_ref[...],
                      preferred_element_type=jnp.float32)
        hid = jnp.maximum(mid, 0.0).astype(jnp.bfloat16)

        # 1x1 conv + residual add (f32 accumulation).
        y = jnp.dot(w1_ref[l], hid, preferred_element_type=jnp.float32)  # [C, N]
        cur = cur + y

    out_ref[...] = jnp.maximum(cur, 0.0)              # final ReLU, dense stores


def _pick_batch_block(B, H, W, C, target_bytes=1 << 20):
    """Batch block size: keep the grid even when possible (v7x has 2 TCs),
    keep the per-step activation block modest, and keep partial blocks
    lane-aligned (Bt*H*W % 128 == 0 unless Bt == B)."""
    hw = H * W
    img_bytes = hw * C * 4
    cands = [bt for bt in range(1, B + 1)
             if B % bt == 0 and (bt == B or (bt * hw) % 128 == 0)]

    def score(bt):
        fits = bt * img_bytes <= target_bytes
        even_grid = (B // bt) % 2 == 0
        return (fits, even_grid, bt)

    return max(cands, key=score)


@jax.jit
def residual_stack(x_nchw, w3_stack, w1_stack):
    """Forward pass matching the PyTorch ResidualStack.

    x_nchw   : [B, C, H, W]        float32, C == in_channels == num_hiddens
    w3_stack : [L, Cmid, C, 3, 3]  float32, per-layer 3x3 conv weights (OIHW, no bias)
    w1_stack : [L, C, Cmid, 1, 1]  float32, per-layer 1x1 conv weights (OIHW, no bias)
    """
    B, C, H, W = x_nchw.shape
    L, Cmid = w3_stack.shape[0], w3_stack.shape[1]
    assert w3_stack.shape[2] == C and w1_stack.shape[1] == C, \
        "residual add requires in_channels == num_hiddens"
    HW = H * W

    Bt = _pick_batch_block(B, H, W, C)
    N = Bt * HW
    grid = (B // Bt,)

    # CHW-flat, lane-dense activations: [C, B*H*W] (one transpose in, one out).
    x2 = jnp.transpose(x_nchw.astype(jnp.float32).reshape(B, C, HW),
                       (1, 0, 2)).reshape(C, B * HW)

    # Weight re-layout hoisted out of the kernel; bf16 operands for the MXU.
    # w3m[l, o, t*C + c] = w3_stack[l, o, c, ky, kx] with t = ky*3 + kx.
    w3m = jnp.transpose(w3_stack, (0, 1, 3, 4, 2)).reshape(L, Cmid, 9 * C)
    w3m = w3m.astype(jnp.bfloat16)
    w1m = w1_stack[:, :, :, 0, 0].astype(jnp.bfloat16)            # [L, C, Cmid]

    # Per-tap validity masks for 'same' padding; they also zero any lanes that
    # wrapped across image boundaries inside a batch block.
    q = jnp.arange(N, dtype=jnp.int32) % HW
    hh, ww = q // W, q % W
    rows = []
    for ky in range(3):
        for kx in range(3):
            dy, dx = ky - 1, kx - 1
            rows.append((hh + dy >= 0) & (hh + dy < H) &
                        (ww + dx >= 0) & (ww + dx < W))
    mask = jnp.stack(rows)[:, None, :].astype(jnp.float32)        # [9, 1, N]

    kernel = functools.partial(_residual_stack_kernel, L=L, C=C, W=W)

    out2 = pl.pallas_call(
        kernel,
        out_shape=jax.ShapeDtypeStruct((C, B * HW), jnp.float32),
        grid_spec=pltpu.PrefetchScalarGridSpec(
            num_scalar_prefetch=0,
            grid=grid,
            in_specs=[
                pl.BlockSpec((C, N), lambda b: (0, b)),                # activations
                pl.BlockSpec((L, Cmid, 9 * C), lambda b: (0, 0, 0)),   # resident w3
                pl.BlockSpec((L, C, Cmid), lambda b: (0, 0, 0)),       # resident w1
                pl.BlockSpec((9, 1, N), lambda b: (0, 0, 0)),          # resident mask
            ],
            out_specs=pl.BlockSpec((C, N), lambda b: (0, b)),
            scratch_shapes=[pltpu.VMEM((9 * C, N), jnp.bfloat16)],     # im2col buffer
        ),
        compiler_params=pltpu.CompilerParams(
            dimension_semantics=("parallel",),    # no cross-step state -> megacore OK
            vmem_limit_bytes=32 * 1024 * 1024,
        ),
    )(x2, w3m, w1m, mask)

    return jnp.transpose(out2.reshape(C, B, HW), (1, 0, 2)).reshape(B, C, H, W)


def _reference(x_nchw, w3_stack, w1_stack):
    """Pure-JAX reference mirroring the PyTorch module (NCHW, OIHW)."""
    y = x_nchw
    for l in range(w3_stack.shape[0]):
        h = jax.nn.relu(y)
        h = lax.conv_general_dilated(
            h, w3_stack[l], window_strides=(1, 1), padding="SAME",
            dimension_numbers=("NCHW", "OIHW", "NCHW"))
        h = jax.nn.relu(h)
        h = lax.conv_general_dilated(
            h, w1_stack[l], window_strides=(1, 1), padding="VALID",
            dimension_numbers=("NCHW", "OIHW", "NCHW"))
        y = y + h
    return jax.nn.relu(y)


if __name__ == "__main__":
    in_channels = num_hiddens = 32
    num_residual_hiddens = 16
    num_residual_layers = 2
    B, H, W = 2, 16, 16

    key = jax.random.PRNGKey(0)
    k_x, k_3, k_1 = jax.random.split(key, 3)

    x = jax.random.normal(k_x, (B, in_channels, H, W), dtype=jnp.float32)

    # Kaiming-uniform-like init, same scale as nn.Conv2d defaults.
    b3 = 1.0 / (in_channels * 9) ** 0.5
    b1 = 1.0 / num_residual_hiddens ** 0.5
    w3 = jax.random.uniform(
        k_3, (num_residual_layers, num_residual_hiddens, in_channels, 3, 3),
        dtype=jnp.float32, minval=-b3, maxval=b3)
    w1 = jax.random.uniform(
        k_1, (num_residual_layers, num_hiddens, num_residual_hiddens, 1, 1),
        dtype=jnp.float32, minval=-b1, maxval=b1)

    out = residual_stack(x, w3, w1)
    jax.block_until_ready(out)

    assert out.shape == (B, num_hiddens, H, W)

    ref = _reference(x, w3, w1)
    err = float(jnp.max(jnp.abs(out - ref)))
    assert err < 2e-2, f"max abs error vs reference: {err}"

    print("KERNEL_OK")
</pallas_src>

<mosaic_0001>
module attributes {stable_mosaic.version = 11 : i64} {
  func.func @_residual_stack_kernel(%arg0: i32, %arg1: memref<32x256xf32, #tpu.memory_space<vmem>>, %arg2: memref<2x16x288xbf16, #tpu.memory_space<vmem>>, %arg3: memref<2x32x16xbf16, #tpu.memory_space<vmem>>, %arg4: memref<9x1x256xf32, #tpu.memory_space<vmem>>, %arg5: memref<32x256xf32, #tpu.memory_space<vmem>>, %arg6: memref<288x256xbf16, #tpu.memory_space<vmem>>) attributes {dimension_semantics = [#tpu.dimension_semantics<parallel>], iteration_bounds = array<i64: 2>, scalar_prefetch = 0 : i64, scratch_operands = 1 : i64, tpu.core_type = #tpu.core_type<tc>, window_params = [{transform_indices = @transform_0, window_bounds = array<i64: 32, 256>}, {pipeline_mode = #tpu.pipeline_mode<synchronous>, transform_indices = @transform_1, window_bounds = array<i64: 2, 16, 288>}, {pipeline_mode = #tpu.pipeline_mode<synchronous>, transform_indices = @transform_2, window_bounds = array<i64: 2, 32, 16>}, {pipeline_mode = #tpu.pipeline_mode<synchronous>, transform_indices = @transform_3, window_bounds = array<i64: 9, 1, 256>}, {transform_indices = @transform_4, window_bounds = array<i64: 32, 256>}]} {
    %c0 = arith.constant 0 : index
    %c0_0 = arith.constant 0 : index
    %0 = vector.load %arg1[%c0, %c0_0] : memref<32x256xf32, #tpu.memory_space<vmem>>, vector<32x256xf32>
    %cst = arith.constant 0.000000e+00 : f32
    %1 = vector.broadcast %cst : f32 to vector<32x256xf32>
    %2 = arith.maximumf %0, %1 : vector<32x256xf32>
    %c17_i32 = arith.constant 17 : i32
    %3 = tpu.dynamic_rotate %2 by %c17_i32 dim 1 : vector<32x256xf32>, i32 -> vector<32x256xf32>
    %c0_1 = arith.constant 0 : index
    %c0_2 = arith.constant 0 : index
    %c0_3 = arith.constant 0 : index
    %4 = vector.load %arg4[%c0_1, %c0_2, %c0_3] : memref<9x1x256xf32, #tpu.memory_space<vmem>>, vector<1x1x256xf32>
    %5 = vector.shape_cast %4 : vector<1x1x256xf32> to vector<1x256xf32>
    %6 = vector.broadcast %5 : vector<1x256xf32> to vector<32x256xf32>
    %7 = arith.mulf %3, %6 : vector<32x256xf32>
    %8 = arith.truncf %7 : vector<32x256xf32> to vector<32x256xbf16>
    %c0_4 = arith.constant 0 : index
    %c0_5 = arith.constant 0 : index
    %9 = vector.load %arg6[%c0_4, %c0_5] : memref<288x256xbf16, #tpu.memory_space<vmem>>, vector<32x256xbf16>
    tpu.vector_store %arg6[%c0_4, %c0_5], %8 {strides = array<i32>} : memref<288x256xbf16, #tpu.memory_space<vmem>>, vector<32x256xbf16>,
    %c16_i32 = arith.constant 16 : i32
    %10 = tpu.dynamic_rotate %2 by %c16_i32 dim 1 : vector<32x256xf32>, i32 -> vector<32x256xf32>
    %c1 = arith.constant 1 : index
    %c0_6 = arith.constant 0 : index
    %c0_7 = arith.constant 0 : index
    %11 = vector.load %arg4[%c1, %c0_6, %c0_7] : memref<9x1x256xf32, #tpu.memory_space<vmem>>, vector<1x1x256xf32>
    %12 = vector.shape_cast %11 : vector<1x1x256xf32> to vector<1x256xf32>
    %13 = vector.broadcast %12 : vector<1x256xf32> to vector<32x256xf32>
    %14 = arith.mulf %10, %13 : vector<32x256xf32>
    %15 = arith.truncf %14 : vector<32x256xf32> to vector<32x256xbf16>
    %c32 = arith.constant 32 : index
    %c0_8 = arith.constant 0 : index
    %16 = vector.load %arg6[%c32, %c0_8] : memref<288x256xbf16, #tpu.memory_space<vmem>>, vector<32x256xbf16>
    tpu.vector_store %arg6[%c32, %c0_8], %15 {strides = array<i32>} : memref<288x256xbf16, #tpu.memory_space<vmem>>, vector<32x256xbf16>,
    %c15_i32 = arith.constant 15 : i32
    %17 = tpu.dynamic_rotate %2 by %c15_i32 dim 1 : vector<32x256xf32>, i32 -> vector<32x256xf32>
    %c2 = arith.constant 2 : index
    %c0_9 = arith.constant 0 : index
    %c0_10 = arith.constant 0 : index
    %18 = vector.load %arg4[%c2, %c0_9, %c0_10] : memref<9x1x256xf32, #tpu.memory_space<vmem>>, vector<1x1x256xf32>
    %19 = vector.shape_cast %18 : vector<1x1x256xf32> to vector<1x256xf32>
    %20 = vector.broadcast %19 : vector<1x256xf32> to vector<32x256xf32>
    %21 = arith.mulf %17, %20 : vector<32x256xf32>
    %22 = arith.truncf %21 : vector<32x256xf32> to vector<32x256xbf16>
    %c64 = arith.constant 64 : index
    %c0_11 = arith.constant 0 : index
    %23 = vector.load %arg6[%c64, %c0_11] : memref<288x256xbf16, #tpu.memory_space<vmem>>, vector<32x256xbf16>
    tpu.vector_store %arg6[%c64, %c0_11], %22 {strides = array<i32>} : memref<288x256xbf16, #tpu.memory_space<vmem>>, vector<32x256xbf16>,
    %c1_i32 = arith.constant 1 : i32
    %24 = tpu.dynamic_rotate %2 by %c1_i32 dim 1 : vector<32x256xf32>, i32 -> vector<32x256xf32>
    %c3 = arith.constant 3 : index
    %c0_12 = arith.constant 0 : index
    %c0_13 = arith.constant 0 : index
    %25 = vector.load %arg4[%c3, %c0_12, %c0_13] : memref<9x1x256xf32, #tpu.memory_space<vmem>>, vector<1x1x256xf32>
    %26 = vector.shape_cast %25 : vector<1x1x256xf32> to vector<1x256xf32>
    %27 = vector.broadcast %26 : vector<1x256xf32> to vector<32x256xf32>
    %28 = arith.mulf %24, %27 : vector<32x256xf32>
    %29 = arith.truncf %28 : vector<32x256xf32> to vector<32x256xbf16>
    %c96 = arith.constant 96 : index
    %c0_14 = arith.constant 0 : index
    %30 = vector.load %arg6[%c96, %c0_14] : memref<288x256xbf16, #tpu.memory_space<vmem>>, vector<32x256xbf16>
    tpu.vector_store %arg6[%c96, %c0_14], %29 {strides = array<i32>} : memref<288x256xbf16, #tpu.memory_space<vmem>>, vector<32x256xbf16>,
    %c4 = arith.constant 4 : index
    %c0_15 = arith.constant 0 : index
    %c0_16 = arith.constant 0 : index
    %31 = vector.load %arg4[%c4, %c0_15, %c0_16] : memref<9x1x256xf32, #tpu.memory_space<vmem>>, vector<1x1x256xf32>
    %32 = vector.shape_cast %31 : vector<1x1x256xf32> to vector<1x256xf32>
    %33 = vector.broadcast %32 : vector<1x256xf32> to vector<32x256xf32>
    %34 = arith.mulf %2, %33 : vector<32x256xf32>
    %35 = arith.truncf %34 : vector<32x256xf32> to vector<32x256xbf16>
    %c128 = arith.constant 128 : index
    %c0_17 = arith.constant 0 : index
    %36 = vector.load %arg6[%c128, %c0_17] : memref<288x256xbf16, #tpu.memory_space<vmem>>, vector<32x256xbf16>
    tpu.vector_store %arg6[%c128, %c0_17], %35 {strides = array<i32>} : memref<288x256xbf16, #tpu.memory_space<vmem>>, vector<32x256xbf16>,
    %c255_i32 = arith.constant 255 : i32
    %37 = tpu.dynamic_rotate %2 by %c255_i32 dim 1 : vector<32x256xf32>, i32 -> vector<32x256xf32>
    %c5 = arith.constant 5 : index
    %c0_18 = arith.constant 0 : index
    %c0_19 = arith.constant 0 : index
    %38 = vector.load %arg4[%c5, %c0_18, %c0_19] : memref<9x1x256xf32, #tpu.memory_space<vmem>>, vector<1x1x256xf32>
    %39 = vector.shape_cast %38 : vector<1x1x256xf32> to vector<1x256xf32>
    %40 = vector.broadcast %39 : vector<1x256xf32> to vector<32x256xf32>
    %41 = arith.mulf %37, %40 : vector<32x256xf32>
    %42 = arith.truncf %41 : vector<32x256xf32> to vector<32x256xbf16>
    %c160 = arith.constant 160 : index
    %c0_20 = arith.constant 0 : index
    %43 = vector.load %arg6[%c160, %c0_20] : memref<288x256xbf16, #tpu.memory_space<vmem>>, vector<32x256xbf16>
    tpu.vector_store %arg6[%c160, %c0_20], %42 {strides = array<i32>} : memref<288x256xbf16, #tpu.memory_space<vmem>>, vector<32x256xbf16>,
    %c241_i32 = arith.constant 241 : i32
    %44 = tpu.dynamic_rotate %2 by %c241_i32 dim 1 : vector<32x256xf32>, i32 -> vector<32x256xf32>
    %c6 = arith.constant 6 : index
    %c0_21 = arith.constant 0 : index
    %c0_22 = arith.constant 0 : index
    %45 = vector.load %arg4[%c6, %c0_21, %c0_22] : memref<9x1x256xf32, #tpu.memory_space<vmem>>, vector<1x1x256xf32>
    %46 = vector.shape_cast %45 : vector<1x1x256xf32> to vector<1x256xf32>
    %47 = vector.broadcast %46 : vector<1x256xf32> to vector<32x256xf32>
    %48 = arith.mulf %44, %47 : vector<32x256xf32>
    %49 = arith.truncf %48 : vector<32x256xf32> to vector<32x256xbf16>
    %c192 = arith.constant 192 : index
    %c0_23 = arith.constant 0 : index
    %50 = vector.load %arg6[%c192, %c0_23] : memref<288x256xbf16, #tpu.memory_space<vmem>>, vector<32x256xbf16>
    tpu.vector_store %arg6[%c192, %c0_23], %49 {strides = array<i32>} : memref<288x256xbf16, #tpu.memory_space<vmem>>, vector<32x256xbf16>,
    %c240_i32 = arith.constant 240 : i32
    %51 = tpu.dynamic_rotate %2 by %c240_i32 dim 1 : vector<32x256xf32>, i32 -> vector<32x256xf32>
    %c7 = arith.constant 7 : index
    %c0_24 = arith.constant 0 : index
    %c0_25 = arith.constant 0 : index
    %52 = vector.load %arg4[%c7, %c0_24, %c0_25] : memref<9x1x256xf32, #tpu.memory_space<vmem>>, vector<1x1x256xf32>
    %53 = vector.shape_cast %52 : vector<1x1x256xf32> to vector<1x256xf32>
    %54 = vector.broadcast %53 : vector<1x256xf32> to vector<32x256xf32>
    %55 = arith.mulf %51, %54 : vector<32x256xf32>
    %56 = arith.truncf %55 : vector<32x256xf32> to vector<32x256xbf16>
    %c224 = arith.constant 224 : index
    %c0_26 = arith.constant 0 : index
    %57 = vector.load %arg6[%c224, %c0_26] : memref<288x256xbf16, #tpu.memory_space<vmem>>, vector<32x256xbf16>
    tpu.vector_store %arg6[%c224, %c0_26], %56 {strides = array<i32>} : memref<288x256xbf16, #tpu.memory_space<vmem>>, vector<32x256xbf16>,
    %c239_i32 = arith.constant 239 : i32
    %58 = tpu.dynamic_rotate %2 by %c239_i32 dim 1 : vector<32x256xf32>, i32 -> vector<32x256xf32>
    %c8 = arith.constant 8 : index
    %c0_27 = arith.constant 0 : index
    %c0_28 = arith.constant 0 : index
    %59 = vector.load %arg4[%c8, %c0_27, %c0_28] : memref<9x1x256xf32, #tpu.memory_space<vmem>>, vector<1x1x256xf32>
    %60 = vector.shape_cast %59 : vector<1x1x256xf32> to vector<1x256xf32>
    %61 = vector.broadcast %60 : vector<1x256xf32> to vector<32x256xf32>
    %62 = arith.mulf %58, %61 : vector<32x256xf32>
    %63 = arith.truncf %62 : vector<32x256xf32> to vector<32x256xbf16>
    %c256 = arith.constant 256 : index
    %c0_29 = arith.constant 0 : index
    %64 = vector.load %arg6[%c256, %c0_29] : memref<288x256xbf16, #tpu.memory_space<vmem>>, vector<32x256xbf16>
    tpu.vector_store %arg6[%c256, %c0_29], %63 {strides = array<i32>} : memref<288x256xbf16, #tpu.memory_space<vmem>>, vector<32x256xbf16>,
    %c0_30 = arith.constant 0 : index
    %c0_31 = arith.constant 0 : index
    %c0_32 = arith.constant 0 : index
    %65 = vector.load %arg2[%c0_30, %c0_31, %c0_32] : memref<2x16x288xbf16, #tpu.memory_space<vmem>>, vector<1x16x288xbf16>
    %66 = vector.shape_cast %65 : vector<1x16x288xbf16> to vector<16x288xbf16>
    %c0_33 = arith.constant 0 : index
    %c0_34 = arith.constant 0 : index
    %67 = vector.load %arg6[%c0_33, %c0_34] : memref<288x256xbf16, #tpu.memory_space<vmem>>, vector<288x256xbf16>
    %cst_35 = arith.constant dense<0.000000e+00> : vector<16x256xf32>
    %68 = tpu.matmul %66, %67, %cst_35 {dimension_numbers = #tpu.dot_dimension_numbers<[1], [0], [0], [1], [0, 0, 1, 1], [], []>} : vector<16x288xbf16>, vector<288x256xbf16>, vector<16x256xf32> -> vector<16x256xf32>
    %cst_36 = arith.constant 0.000000e+00 : f32
    %69 = vector.broadcast %cst_36 : f32 to vector<16x256xf32>
    %70 = arith.maximumf %68, %69 : vector<16x256xf32>
    %71 = arith.truncf %70 : vector<16x256xf32> to vector<16x256xbf16>
    %c0_37 = arith.constant 0 : index
    %c0_38 = arith.constant 0 : index
    %c0_39 = arith.constant 0 : index
    %72 = vector.load %arg3[%c0_37, %c0_38, %c0_39] : memref<2x32x16xbf16, #tpu.memory_space<vmem>>, vector<1x32x16xbf16>
    %73 = vector.shape_cast %72 : vector<1x32x16xbf16> to vector<32x16xbf16>
    %cst_40 = arith.constant dense<0.000000e+00> : vector<32x256xf32>
    %74 = tpu.matmul %73, %71, %cst_40 {dimension_numbers = #tpu.dot_dimension_numbers<[1], [0], [0], [1], [0, 0, 1, 1], [], []>} : vector<32x16xbf16>, vector<16x256xbf16>, vector<32x256xf32> -> vector<32x256xf32>
    %75 = arith.addf %0, %74 : vector<32x256xf32>
    %cst_41 = arith.constant 0.000000e+00 : f32
    %76 = vector.broadcast %cst_41 : f32 to vector<32x256xf32>
    %77 = arith.maximumf %75, %76 : vector<32x256xf32>
    %c17_i32_42 = arith.constant 17 : i32
    %78 = tpu.dynamic_rotate %77 by %c17_i32_42 dim 1 : vector<32x256xf32>, i32 -> vector<32x256xf32>
    %c0_43 = arith.constant 0 : index
    %c0_44 = arith.constant 0 : index
    %c0_45 = arith.constant 0 : index
    %79 = vector.load %arg4[%c0_43, %c0_44, %c0_45] : memref<9x1x256xf32, #tpu.memory_space<vmem>>, vector<1x1x256xf32>
    %80 = vector.shape_cast %79 : vector<1x1x256xf32> to vector<1x256xf32>
    %81 = vector.broadcast %80 : vector<1x256xf32> to vector<32x256xf32>
    %82 = arith.mulf %78, %81 : vector<32x256xf32>
    %83 = arith.truncf %82 : vector<32x256xf32> to vector<32x256xbf16>
    %c0_46 = arith.constant 0 : index
    %c0_47 = arith.constant 0 : index
    %84 = vector.load %arg6[%c0_46, %c0_47] : memref<288x256xbf16, #tpu.memory_space<vmem>>, vector<32x256xbf16>
    tpu.vector_store %arg6[%c0_46, %c0_47], %83 {strides = array<i32>} : memref<288x256xbf16, #tpu.memory_space<vmem>>, vector<32x256xbf16>,
    %c16_i32_48 = arith.constant 16 : i32
    %85 = tpu.dynamic_rotate %77 by %c16_i32_48 dim 1 : vector<32x256xf32>, i32 -> vector<32x256xf32>
    %c1_49 = arith.constant 1 : index
    %c0_50 = arith.constant 0 : index
    %c0_51 = arith.constant 0 : index
    %86 = vector.load %arg4[%c1_49, %c0_50, %c0_51] : memref<9x1x256xf32, #tpu.memory_space<vmem>>, vector<1x1x256xf32>
    %87 = vector.shape_cast %86 : vector<1x1x256xf32> to vector<1x256xf32>
    %88 = vector.broadcast %87 : vector<1x256xf32> to vector<32x256xf32>
    %89 = arith.mulf %85, %88 : vector<32x256xf32>
    %90 = arith.truncf %89 : vector<32x256xf32> to vector<32x256xbf16>
    %c32_52 = arith.constant 32 : index
    %c0_53 = arith.constant 0 : index
    %91 = vector.load %arg6[%c32_52, %c0_53] : memref<288x256xbf16, #tpu.memory_space<vmem>>, vector<32x256xbf16>
    tpu.vector_store %arg6[%c32_52, %c0_53], %90 {strides = array<i32>} : memref<288x256xbf16, #tpu.memory_space<vmem>>, vector<32x256xbf16>,
    %c15_i32_54 = arith.constant 15 : i32
    %92 = tpu.dynamic_rotate %77 by %c15_i32_54 dim 1 : vector<32x256xf32>, i32 -> vector<32x256xf32>
    %c2_55 = arith.constant 2 : index
    %c0_56 = arith.constant 0 : index
    %c0_57 = arith.constant 0 : index
    %93 = vector.load %arg4[%c2_55, %c0_56, %c0_57] : memref<9x1x256xf32, #tpu.memory_space<vmem>>, vector<1x1x256xf32>
    %94 = vector.shape_cast %93 : vector<1x1x256xf32> to vector<1x256xf32>
    %95 = vector.broadcast %94 : vector<1x256xf32> to vector<32x256xf32>
    %96 = arith.mulf %92, %95 : vector<32x256xf32>
    %97 = arith.truncf %96 : vector<32x256xf32> to vector<32x256xbf16>
    %c64_58 = arith.constant 64 : index
    %c0_59 = arith.constant 0 : index
    %98 = vector.load %arg6[%c64_58, %c0_59] : memref<288x256xbf16, #tpu.memory_space<vmem>>, vector<32x256xbf16>
    tpu.vector_store %arg6[%c64_58, %c0_59], %97 {strides = array<i32>} : memref<288x256xbf16, #tpu.memory_space<vmem>>, vector<32x256xbf16>,
    %c1_i32_60 = arith.constant 1 : i32
    %99 = tpu.dynamic_rotate %77 by %c1_i32_60 dim 1 : vector<32x256xf32>, i32 -> vector<32x256xf32>
    %c3_61 = arith.constant 3 : index
    %c0_62 = arith.constant 0 : index
    %c0_63 = arith.constant 0 : index
    %100 = vector.load %arg4[%c3_61, %c0_62, %c0_63] : memref<9x1x256xf32, #tpu.memory_space<vmem>>, vector<1x1x256xf32>
    %101 = vector.shape_cast %100 : vector<1x1x256xf32> to vector<1x256xf32>
    %102 = vector.broadcast %101 : vector<1x256xf32> to vector<32x256xf32>
    %103 = arith.mulf %99, %102 : vector<32x256xf32>
    %104 = arith.truncf %103 : vector<32x256xf32> to vector<32x256xbf16>
    %c96_64 = arith.constant 96 : index
    %c0_65 = arith.constant 0 : index
    %105 = vector.load %arg6[%c96_64, %c0_65] : memref<288x256xbf16, #tpu.memory_space<vmem>>, vector<32x256xbf16>
    tpu.vector_store %arg6[%c96_64, %c0_65], %104 {strides = array<i32>} : memref<288x256xbf16, #tpu.memory_space<vmem>>, vector<32x256xbf16>,
    %c4_66 = arith.constant 4 : index
    %c0_67 = arith.constant 0 : index
    %c0_68 = arith.constant 0 : index
    %106 = vector.load %arg4[%c4_66, %c0_67, %c0_68] : memref<9x1x256xf32, #tpu.memory_space<vmem>>, vector<1x1x256xf32>
    %107 = vector.shape_cast %106 : vector<1x1x256xf32> to vector<1x256xf32>
    %108 = vector.broadcast %107 : vector<1x256xf32> to vector<32x256xf32>
    %109 = arith.mulf %77, %108 : vector<32x256xf32>
    %110 = arith.truncf %109 : vector<32x256xf32> to vector<32x256xbf16>
    %c128_69 = arith.constant 128 : index
    %c0_70 = arith.constant 0 : index
    %111 = vector.load %arg6[%c128_69, %c0_70] : memref<288x256xbf16, #tpu.memory_space<vmem>>, vector<32x256xbf16>
    tpu.vector_store %arg6[%c128_69, %c0_70], %110 {strides = array<i32>} : memref<288x256xbf16, #tpu.memory_space<vmem>>, vector<32x256xbf16>,
    %c255_i32_71 = arith.constant 255 : i32
    %112 = tpu.dynamic_rotate %77 by %c255_i32_71 dim 1 : vector<32x256xf32>, i32 -> vector<32x256xf32>
    %c5_72 = arith.constant 5 : index
    %c0_73 = arith.constant 0 : index
    %c0_74 = arith.constant 0 : index
    %113 = vector.load %arg4[%c5_72, %c0_73, %c0_74] : memref<9x1x256xf32, #tpu.memory_space<vmem>>, vector<1x1x256xf32>
    %114 = vector.shape_cast %113 : vector<1x1x256xf32> to vector<1x256xf32>
    %115 = vector.broadcast %114 : vector<1x256xf32> to vector<32x256xf32>
    %116 = arith.mulf %112, %115 : vector<32x256xf32>
    %117 = arith.truncf %116 : vector<32x256xf32> to vector<32x256xbf16>
    %c160_75 = arith.constant 160 : index
    %c0_76 = arith.constant 0 : index
    %118 = vector.load %arg6[%c160_75, %c0_76] : memref<288x256xbf16, #tpu.memory_space<vmem>>, vector<32x256xbf16>
    tpu.vector_store %arg6[%c160_75, %c0_76], %117 {strides = array<i32>} : memref<288x256xbf16, #tpu.memory_space<vmem>>, vector<32x256xbf16>,
    %c241_i32_77 = arith.constant 241 : i32
    %119 = tpu.dynamic_rotate %77 by %c241_i32_77 dim 1 : vector<32x256xf32>, i32 -> vector<32x256xf32>
    %c6_78 = arith.constant 6 : index
    %c0_79 = arith.constant 0 : index
    %c0_80 = arith.constant 0 : index
    %120 = vector.load %arg4[%c6_78, %c0_79, %c0_80] : memref<9x1x256xf32, #tpu.memory_space<vmem>>, vector<1x1x256xf32>
    %121 = vector.shape_cast %120 : vector<1x1x256xf32> to vector<1x256xf32>
    %122 = vector.broadcast %121 : vector<1x256xf32> to vector<32x256xf32>
    %123 = arith.mulf %119, %122 : vector<32x256xf32>
    %124 = arith.truncf %123 : vector<32x256xf32> to vector<32x256xbf16>
    %c192_81 = arith.constant 192 : index
    %c0_82 = arith.constant 0 : index
    %125 = vector.load %arg6[%c192_81, %c0_82] : memref<288x256xbf16, #tpu.memory_space<vmem>>, vector<32x256xbf16>
    tpu.vector_store %arg6[%c192_81, %c0_82], %124 {strides = array<i32>} : memref<288x256xbf16, #tpu.memory_space<vmem>>, vector<32x256xbf16>,
    %c240_i32_83 = arith.constant 240 : i32
    %126 = tpu.dynamic_rotate %77 by %c240_i32_83 dim 1 : vector<32x256xf32>, i32 -> vector<32x256xf32>
    %c7_84 = arith.constant 7 : index
    %c0_85 = arith.constant 0 : index
    %c0_86 = arith.constant 0 : index
    %127 = vector.load %arg4[%c7_84, %c0_85, %c0_86] : memref<9x1x256xf32, #tpu.memory_space<vmem>>, vector<1x1x256xf32>
    %128 = vector.shape_cast %127 : vector<1x1x256xf32> to vector<1x256xf32>
    %129 = vector.broadcast %128 : vector<1x256xf32> to vector<32x256xf32>
    %130 = arith.mulf %126, %129 : vector<32x256xf32>
    %131 = arith.truncf %130 : vector<32x256xf32> to vector<32x256xbf16>
    %c224_87 = arith.constant 224 : index
    %c0_88 = arith.constant 0 : index
    %132 = vector.load %arg6[%c224_87, %c0_88] : memref<288x256xbf16, #tpu.memory_space<vmem>>, vector<32x256xbf16>
    tpu.vector_store %arg6[%c224_87, %c0_88], %131 {strides = array<i32>} : memref<288x256xbf16, #tpu.memory_space<vmem>>, vector<32x256xbf16>,
    %c239_i32_89 = arith.constant 239 : i32
    %133 = tpu.dynamic_rotate %77 by %c239_i32_89 dim 1 : vector<32x256xf32>, i32 -> vector<32x256xf32>
    %c8_90 = arith.constant 8 : index
    %c0_91 = arith.constant 0 : index
    %c0_92 = arith.constant 0 : index
    %134 = vector.load %arg4[%c8_90, %c0_91, %c0_92] : memref<9x1x256xf32, #tpu.memory_space<vmem>>, vector<1x1x256xf32>
    %135 = vector.shape_cast %134 : vector<1x1x256xf32> to vector<1x256xf32>
    %136 = vector.broadcast %135 : vector<1x256xf32> to vector<32x256xf32>
    %137 = arith.mulf %133, %136 : vector<32x256xf32>
    %138 = arith.truncf %137 : vector<32x256xf32> to vector<32x256xbf16>
    %c256_93 = arith.constant 256 : index
    %c0_94 = arith.constant 0 : index
    %139 = vector.load %arg6[%c256_93, %c0_94] : memref<288x256xbf16, #tpu.memory_space<vmem>>, vector<32x256xbf16>
    tpu.vector_store %arg6[%c256_93, %c0_94], %138 {strides = array<i32>} : memref<288x256xbf16, #tpu.memory_space<vmem>>, vector<32x256xbf16>,
    %c1_95 = arith.constant 1 : index
    %c0_96 = arith.constant 0 : index
    %c0_97 = arith.constant 0 : index
    %140 = vector.load %arg2[%c1_95, %c0_96, %c0_97] : memref<2x16x288xbf16, #tpu.memory_space<vmem>>, vector<1x16x288xbf16>
    %141 = vector.shape_cast %140 : vector<1x16x288xbf16> to vector<16x288xbf16>
    %c0_98 = arith.constant 0 : index
    %c0_99 = arith.constant 0 : index
    %142 = vector.load %arg6[%c0_98, %c0_99] : memref<288x256xbf16, #tpu.memory_space<vmem>>, vector<288x256xbf16>
    %cst_100 = arith.constant dense<0.000000e+00> : vector<16x256xf32>
    %143 = tpu.matmul %141, %142, %cst_100 {dimension_numbers = #tpu.dot_dimension_numbers<[1], [0], [0], [1], [0, 0, 1, 1], [], []>} : vector<16x288xbf16>, vector<288x256xbf16>, vector<16x256xf32> -> vector<16x256xf32>
    %cst_101 = arith.constant 0.000000e+00 : f32
    %144 = vector.broadcast %cst_101 : f32 to vector<16x256xf32>
    %145 = arith.maximumf %143, %144 : vector<16x256xf32>
    %146 = arith.truncf %145 : vector<16x256xf32> to vector<16x256xbf16>
    %c1_102 = arith.constant 1 : index
    %c0_103 = arith.constant 0 : index
    %c0_104 = arith.constant 0 : index
    %147 = vector.load %arg3[%c1_102, %c0_103, %c0_104] : memref<2x32x16xbf16, #tpu.memory_space<vmem>>, vector<1x32x16xbf16>
    %148 = vector.shape_cast %147 : vector<1x32x16xbf16> to vector<32x16xbf16>
    %cst_105 = arith.constant dense<0.000000e+00> : vector<32x256xf32>
    %149 = tpu.matmul %148, %146, %cst_105 {dimension_numbers = #tpu.dot_dimension_numbers<[1], [0], [0], [1], [0, 0, 1, 1], [], []>} : vector<32x16xbf16>, vector<16x256xbf16>, vector<32x256xf32> -> vector<32x256xf32>
    %150 = arith.addf %75, %149 : vector<32x256xf32>
    %cst_106 = arith.constant 0.000000e+00 : f32
    %151 = vector.broadcast %cst_106 : f32 to vector<32x256xf32>
    %152 = arith.maximumf %150, %151 : vector<32x256xf32>
    %c0_107 = arith.constant 0 : index
    %c0_108 = arith.constant 0 : index
    %153 = vector.load %arg5[%c0_107, %c0_108] : memref<32x256xf32, #tpu.memory_space<vmem>>, vector<32x256xf32>
    tpu.vector_store %arg5[%c0_107, %c0_108], %152 {strides = array<i32>} : memref<32x256xf32, #tpu.memory_space<vmem>>, vector<32x256xf32>,
    return
  }
  func.func @transform_0(%arg0: i32) -> (i32, i32) {
    %c0_i32 = arith.constant 0 : i32
    %c0_i32_0 = arith.constant 0 : i32
    return %c0_i32, %arg0 : i32, i32
  }
  func.func @transform_1(%arg0: i32) -> (i32, i32, i32) {
    %c0_i32 = arith.constant 0 : i32
    %c0_i32_0 = arith.constant 0 : i32
    %c0_i32_1 = arith.constant 0 : i32
    %c0_i32_2 = arith.constant 0 : i32
    return %c0_i32, %c0_i32_0, %c0_i32_1 : i32, i32, i32
  }
  func.func @transform_2(%arg0: i32) -> (i32, i32, i32) {
    %c0_i32 = arith.constant 0 : i32
    %c0_i32_0 = arith.constant 0 : i32
    %c0_i32_1 = arith.constant 0 : i32
    %c0_i32_2 = arith.constant 0 : i32
    return %c0_i32, %c0_i32_0, %c0_i32_1 : i32, i32, i32
  }
  func.func @transform_3(%arg0: i32) -> (i32, i32, i32) {
    %c0_i32 = arith.constant 0 : i32
    %c0_i32_0 = arith.constant 0 : i32
    %c0_i32_1 = arith.constant 0 : i32
    %c0_i32_2 = arith.constant 0 : i32
    return %c0_i32, %c0_i32_0, %c0_i32_1 : i32, i32, i32
  }
  func.func @transform_4(%arg0: i32) -> (i32, i32) {
    %c0_i32 = arith.constant 0 : i32
    %c0_i32_0 = arith.constant 0 : i32
    return %c0_i32, %arg0 : i32, i32
  }
}

</mosaic_0001>

<llo_original>
// kernel: residual_stack.1
$region0: #{residual_stack.1}
  #allocation0 [shape = 'u32[]', space=smem, size = 0x4, offset = 0x4, fixed_abs, tag = 'smem constant byte address 0x4 - core index']
  #allocation1 [shape = 'u32[72,128]{1,0:T(1,128)}', space=vmem, size = 0x9000, scoped, tag = 'internal scratch']
  #allocation2 [shape = 'bf16[288,256]{1,0:T(8,128)(2,1)}', space=vmem, size = 0x24000, scoped, tag = 'scratch operand']
  %s0 = inlined_call_operand.vmem [shape: f32[32,512], index: 0, kind: input, shape index: {}]
  %s1 = inlined_call_operand.vmem [shape: bf16[2,16,288], index: 1, kind: input, shape index: {}]
  %s2 = inlined_call_operand.vmem [shape: bf16[2,32,16], index: 2, kind: input, shape index: {}]
  %s3 = inlined_call_operand.vmem [shape: f32[9,1,256], index: 3, kind: input, shape index: {}]
  %s4 = inlined_call_operand.vmem [shape: f32[32,512], index: 4, kind: output, shape index: {}]
  %s5 = sld [smem:[#allocation0]]
  $region91: #{residual_stack.1} parent=0
    _
  %s7 = ssub.s32 1, %s5
  %s8 = scalar_select 0, %s7, %s5
  $region1: #{residual_stack.1} parent=0
    #allocation3 [shape = 'u8[65536]{0}', space=vmem, size = 0x10000, scoped, tag = 'input window, operand 0']
    #allocation4 [shape = 'u8[65536]{0}', space=vmem, size = 0x10000, scoped, tag = 'output window, operand 0']
    loop: start=0, step=1, limit=4
    $region2: #{residual_stack.1} parent=1 // loop_pre_header
      _
    $region3: #{residual_stack.1} parent=1 // loop_header
      %s10 = sphi 0, %s14
      %p11 = scmp.ge.s32.totalorder %s10, 4
      %s20 = sphi 0, %s22
      %s23 = sphi 0, %s20
      %s24 = sphi 0, %s23
      %s40 = sphi 0, %s24
      %s44 = sphi 0, %s44
      %s46 = sphi 0, %s44
      %s47 = sphi 0, %s46
      %s61 = sphi 0, %s47
      %s65 = sphi 0, %s65
      %s67 = sphi 0, %s65
      %s68 = sphi 0, %s67
      %s82 = sphi 0, %s68
      %s86 = sphi 0, %s86
      %s88 = sphi 0, %s86
      %s89 = sphi 0, %s88
      %s103 = sphi 0, %s89
      %s109 = sphi 0, %s111
      %s112 = sphi 0, %s109
      %s113 = sphi 0, %s112
      %s129 = sphi 0, %s113
    $region4: #{residual_stack.1} parent=1 // loop_header_branch
      %13 = sbr.rel (%p11) target = $region8
    $region5: #{residual_stack.1} parent=1 // loop_body
      %s15 = ssub.s32 %s10, 1
      %s16 = ssub.s32 %s10, 2
      %s17 = sadd.s32 %s10, 1
      %s18 = ssub.s32 %s10, %s17
      %p19 = scmp.eq.s32.totalorder %s18, 0
      %s21 = sadd.s32 %s20, 1
      %s22 = scalar_select %p19, %s20, %s21
      %p25 = pneg %p19
      %p26 = scmp.eq.s32.totalorder %s10, 1
      %p27 = por %p25, %p26
      %p28 = scmp.ne.s32.totalorder %s20, %s23
      %p29 = scmp.eq.s32.totalorder %s10, 0
      %p30 = por %p28, %p29
      %p31 = scmp.ne.s32.totalorder %s20, %s23
      %p32 = scmp.eq.s32.totalorder %s15, 1
      %p33 = por %p31, %p32
      %p34 = scmp.ne.s32.totalorder %s23, %s24
      %p35 = scmp.eq.s32.totalorder %s15, 0
      %p36 = por %p34, %p35
      %p37 = scmp.ne.s32.totalorder %s23, %s24
      %p38 = scmp.eq.s32.totalorder %s16, 1
      %p39 = por %p37, %p38
      %p41 = scmp.ne.s32.totalorder %s24, %s40
      %p42 = scmp.eq.s32.totalorder %s16, 0
      %p43 = por %p41, %p42
      %s45 = sadd.s32 %s44, 1
      %p48 = scmp.eq.s32.totalorder %s10, 1
      %p49 = scmp.ne.s32.totalorder %s44, %s46
      %p50 = scmp.eq.s32.totalorder %s10, 0
      %p51 = por %p49, %p50
      %p52 = scmp.ne.s32.totalorder %s44, %s46
      %p53 = scmp.eq.s32.totalorder %s15, 1
      %p54 = por %p52, %p53
      %p55 = scmp.ne.s32.totalorder %s46, %s47
      %p56 = scmp.eq.s32.totalorder %s15, 0
      %p57 = por %p55, %p56
      %p58 = scmp.ne.s32.totalorder %s46, %s47
      %p59 = scmp.eq.s32.totalorder %s16, 1
      %p60 = por %p58, %p59
      %p62 = scmp.ne.s32.totalorder %s47, %s61
      %p63 = scmp.eq.s32.totalorder %s16, 0
      %p64 = por %p62, %p63
      %s66 = sadd.s32 %s65, 1
      %p69 = scmp.eq.s32.totalorder %s10, 1
      %p70 = scmp.ne.s32.totalorder %s65, %s67
      %p71 = scmp.eq.s32.totalorder %s10, 0
      %p72 = por %p70, %p71
      %p73 = scmp.ne.s32.totalorder %s65, %s67
      %p74 = scmp.eq.s32.totalorder %s15, 1
      %p75 = por %p73, %p74
      %p76 = scmp.ne.s32.totalorder %s67, %s68
      %p77 = scmp.eq.s32.totalorder %s15, 0
      %p78 = por %p76, %p77
      %p79 = scmp.ne.s32.totalorder %s67, %s68
      %p80 = scmp.eq.s32.totalorder %s16, 1
      %p81 = por %p79, %p80
      %p83 = scmp.ne.s32.totalorder %s68, %s82
      %p84 = scmp.eq.s32.totalorder %s16, 0
      %p85 = por %p83, %p84
      %s87 = sadd.s32 %s86, 1
      %p90 = scmp.eq.s32.totalorder %s10, 1
      %p91 = scmp.ne.s32.totalorder %s86, %s88
      %p92 = scmp.eq.s32.totalorder %s10, 0
      %p93 = por %p91, %p92
      %p94 = scmp.ne.s32.totalorder %s86, %s88
      %p95 = scmp.eq.s32.totalorder %s15, 1
      %p96 = por %p94, %p95
      %p97 = scmp.ne.s32.totalorder %s88, %s89
      %p98 = scmp.eq.s32.totalorder %s15, 0
      %p99 = por %p97, %p98
      %p100 = scmp.ne.s32.totalorder %s88, %s89
      %p101 = scmp.eq.s32.totalorder %s16, 1
      %p102 = por %p100, %p101
      %p104 = scmp.ne.s32.totalorder %s89, %s103
      %p105 = scmp.eq.s32.totalorder %s16, 0
      %p106 = por %p104, %p105
      %s107 = ssub.s32 %s10, %s17
      %p108 = scmp.eq.s32.totalorder %s107, 0
      %s110 = sadd.s32 %s109, 1
      %s111 = scalar_select %p108, %s109, %s110
      %p114 = pneg %p108
      %p115 = scmp.eq.s32.totalorder %s10, 1
      %p116 = por %p114, %p115
      %p117 = scmp.ne.s32.totalorder %s109, %s112
      %p118 = scmp.eq.s32.totalorder %s10, 0
      %p119 = por %p117, %p118
      %p120 = scmp.ne.s32.totalorder %s109, %s112
      %p121 = scmp.eq.s32.totalorder %s15, 1
      %p122 = por %p120, %p121
      %p123 = scmp.ne.s32.totalorder %s112, %s113
      %p124 = scmp.eq.s32.totalorder %s15, 0
      %p125 = por %p123, %p124
      %p126 = scmp.ne.s32.totalorder %s112, %s113
      %p127 = scmp.eq.s32.totalorder %s16, 1
      %p128 = por %p126, %p127
      %p130 = scmp.ne.s32.totalorder %s113, %s129
      %p131 = scmp.eq.s32.totalorder %s16, 0
      %p132 = por %p130, %p131
      %p133 = scmp.le.s32.totalorder 1, %s10
      %p134 = scmp.lt.s32.totalorder %s10, 3
      %p135 = pnand %p133, %p134
      %p136 = pneg %p135
      // Predicated region
      $region9: #{residual_stack.1} parent=5 // pred_check
        _
      $region10: #{residual_stack.1} parent=5 // pred_check_branch
        %138 = sbr.rel (%p135) target = $region12
      $region11: #{residual_stack.1} parent=5 // pred_region
        %s139 = ssub.s32 %s10, 1
        // Predicated region
        $region13: #{residual_stack.1} parent=11 // pred_check
          %p140 = pneg %p57
        $region14: #{residual_stack.1} parent=11 // pred_check_branch
          %142 = sbr.rel (%p140) target = $region16
        $region15: #{residual_stack.1} parent=11 // pred_region
          _
        $region16: #{residual_stack.1} parent=11 // pred_fallthru
          _
        // Predicated region
        $region17: #{residual_stack.1} parent=11 // pred_check
          %p143 = pneg %p78
        $region18: #{residual_stack.1} parent=11 // pred_check_branch
          %145 = sbr.rel (%p143) target = $region20
        $region19: #{residual_stack.1} parent=11 // pred_region
          _
        $region20: #{residual_stack.1} parent=11 // pred_fallthru
          _
        // Predicated region
        $region21: #{residual_stack.1} parent=11 // pred_check
          %p146 = pneg %p99
        $region22: #{residual_stack.1} parent=11 // pred_check_branch
          %148 = sbr.rel (%p146) target = $region24
        $region23: #{residual_stack.1} parent=11 // pred_region
          _
        $region24: #{residual_stack.1} parent=11 // pred_fallthru
          _
      $region12: #{residual_stack.1} parent=5 // pred_fallthru
        _
      %p149 = scmp.lt.s32.totalorder %s10, 2
      // Predicated region
      $region25: #{residual_stack.1} parent=5 // pred_check
        %p150 = pneg %p149
      $region26: #{residual_stack.1} parent=5 // pred_check_branch
        %152 = sbr.rel (%p150) target = $region28
      $region27: #{residual_stack.1} parent=5 // pred_region
        // Predicated region
        $region29: #{residual_stack.1} parent=27 // pred_check
          %p153 = pneg %p30
        $region30: #{residual_stack.1} parent=27 // pred_check_branch
          %155 = sbr.rel (%p153) target = $region32
        $region31: #{residual_stack.1} parent=27 // pred_region
          %s156 = sand.u32 %s20, 1
          %s157 = sand.u32 %s20, 1
          %s158 = smul.addr %s157, 64
          %s159 = scalar_lea.vmem [#allocation3], %s158
          %s160 = smul.u32 2, %s10
          %s161 = smul.addr %s160, 8
          %s162 = scalar_lea.vmem %s0, %s161
          // Predicated region
          $region33: #{residual_stack.1} parent=31 // pred_check
            _
          $region34: #{residual_stack.1} parent=31 // pred_check_branch
            %164 = sbr.rel (0) target = $region36
          $region35: #{residual_stack.1} parent=31 // pred_region
            // Predicated region
            $region37: #{residual_stack.1} parent=35 // pred_check
              _
            $region38: #{residual_stack.1} parent=35 // pred_check_branch
              %166 = sbr.rel (0) target = $region40
            $region39: #{residual_stack.1} parent=35 // pred_region
              loop: start=0, step=1, limit=1
              $region41: #{residual_stack.1} parent=39 // loop_pre_header
                _
              $region42: #{residual_stack.1} parent=39 // loop_header
                %s168 = sphi 0, %s172
                %p169 = scmp.ge.s32.totalorder %s168, 1
                %s173 = sphi %s162, %s162
                %s174 = sphi %s159, %s159
              $region43: #{residual_stack.1} parent=39 // loop_header_branch
                %171 = sbr.rel (%p169) target = $region47
              $region44: #{residual_stack.1} parent=39 // loop_body
                %v175 = vld [vmem:[%s173] sm:$0xff]
                %176 = vst [vmem:[%s174] sm:$0xff] %v175
                %v177 = vld [vmem:[%s173 + $0x8] sm:$0xff]
                %178 = vst [vmem:[%s174 + $0x8] sm:$0xff] %v177
                %v179 = vld [vmem:[%s173 + $0x20] sm:$0xff]
                %180 = vst [vmem:[%s174 + $0x10] sm:$0xff] %v179
                %v181 = vld [vmem:[%s173 + $0x28] sm:$0xff]
                %182 = vst [vmem:[%s174 + $0x18] sm:$0xff] %v181
                %v183 = vld [vmem:[%s173 + $0x40] sm:$0xff]
                %184 = vst [vmem:[%s174 + $0x20] sm:$0xff] %v183
                %v185 = vld [vmem:[%s173 + $0x48] sm:$0xff]
                %186 = vst [vmem:[%s174 + $0x28] sm:$0xff] %v185
                %v187 = vld [vmem:[%s173 + $0x60] sm:$0xff]
                %188 = vst [vmem:[%s174 + $0x30] sm:$0xff] %v187
                %v189 = vld [vmem:[%s173 + $0x68] sm:$0xff]
                %190 = vst [vmem:[%s174 + $0x38] sm:$0xff] %v189
              $region45: #{residual_stack.1} parent=39 // loop_footer
                %s172 = sadd.s32 1, %s168
              $region46: #{residual_stack.1} parent=39 // loop_footer_branch
                %167 = sbr.rel target = $region42
              $region47: #{residual_stack.1} parent=39 // loop_exit
                _
            $region40: #{residual_stack.1} parent=35 // pred_fallthru
              _
            // Predicated region
            $region48: #{residual_stack.1} parent=35 // pred_check
              _
            $region49: #{residual_stack.1} parent=35 // pred_check_branch
              %192 = sbr.rel target = $region51
            $region50: #{residual_stack.1} parent=35 // pred_region
              _
            $region51: #{residual_stack.1} parent=35 // pred_fallthru
              _
          $region36: #{residual_stack.1} parent=31 // pred_fallthru
            _
          %193 = vnop
        $region32: #{residual_stack.1} parent=27 // pred_fallthru
          _
      $region28: #{residual_stack.1} parent=5 // pred_fallthru
        _
      %p194 = scmp.le.s32.totalorder 1, %s10
      %p195 = scmp.lt.s32.totalorder %s10, 3
      %p196 = pnand %p194, %p195
      %p197 = pneg %p196
      // Predicated region
      $region52: #{residual_stack.1} parent=5 // pred_check
        _
      $region53: #{residual_stack.1} parent=5 // pred_check_branch
        %199 = sbr.rel (%p196) target = $region55
      $region54: #{residual_stack.1} parent=5 // pred_region
        %s200 = ssub.s32 %s10, 1
        %s201 = sand.u32 %s23, 1
        %s202 = sand.u32 %s23, 1
        %s203 = smul.addr %s202, 64
        %s204 = scalar_lea.vmem [#allocation3], %s203
        // Predicated region
        $region56: #{residual_stack.1} parent=54 // pred_check
          %p205 = pneg %p36
        $region57: #{residual_stack.1} parent=54 // pred_check_branch
          %207 = sbr.rel (%p205) target = $region59
        $region58: #{residual_stack.1} parent=54 // pred_region
          _
        $region59: #{residual_stack.1} parent=54 // pred_fallthru
          _
        %s208 = sand.u32 %s23, 1
        %s209 = sand.u32 %s23, 1
        %s210 = smul.addr %s209, 64
        %s211 = scalar_lea.vmem [#allocation3], %s210
        %p212 = pneg %p36
        %p213 = pneg %p33
        %p214 = pneg %p57
        %p215 = pneg %p54
        %p216 = pneg %p78
        %p217 = pneg %p75
        %p218 = pneg %p99
        %p219 = pneg %p96
        %p220 = pneg %p125
        %p221 = pneg %p122
        %s222 = sand.u32 %s112, 1
        %s223 = sand.u32 %s112, 1
        %s224 = smul.addr %s223, 64
        %s225 = scalar_lea.vmem [#allocation4], %s224
        %s226 = smul.u32 2, %s15
        %s227 = smul.u32 2, %s15
        %v229 = vld [vmem:[%s204] sm:$0xff]
        %v230 = vld [vmem:[%s204 + $0x8] sm:$0xff]
        %v231 = vld [vmem:[%s204 + $0x10] sm:$0xff]
        %v232 = vld [vmem:[%s204 + $0x18] sm:$0xff]
        %v233 = vld [vmem:[%s204 + $0x20] sm:$0xff]
        %v234 = vld [vmem:[%s204 + $0x28] sm:$0xff]
        %v235 = vld [vmem:[%s204 + $0x30] sm:$0xff]
        %v236 = vld [vmem:[%s204 + $0x38] sm:$0xff]
        %v237 = vmax.f32 %v229, 0.0
        %v238 = vmax.f32 %v230, 0.0
        %v239 = vmax.f32 %v231, 0.0
        %v240 = vmax.f32 %v232, 0.0
        %v241 = vmax.f32 %v233, 0.0
        %v242 = vmax.f32 %v234, 0.0
        %v243 = vmax.f32 %v235, 0.0
        %v244 = vmax.f32 %v236, 0.0
        %245 = vrot.lane.b32.xlu0 %v237, 17
        %v246 = vpop.permute.xlu0 %245
        %247 = vrot.lane.b32.xlu0 %v239, 17
        %v248 = vpop.permute.xlu0 %247
        %249 = vrot.lane.b32.xlu0 %v241, 17
        %v250 = vpop.permute.xlu0 %249
        %251 = vrot.lane.b32.xlu0 %v243, 17
        %v252 = vpop.permute.xlu0 %251
        %253 = vrot.lane.b32.xlu0 %v238, 17
        %v254 = vpop.permute.xlu0 %253
        %255 = vrot.lane.b32.xlu0 %v240, 17
        %v256 = vpop.permute.xlu0 %255
        %257 = vrot.lane.b32.xlu0 %v242, 17
        %v258 = vpop.permute.xlu0 %257
        %259 = vrot.lane.b32.xlu0 %v244, 17
        %v260 = vpop.permute.xlu0 %259
        %v261 = vlaneseq
        %v262 = vand.u32 %v261, 127
        %vm263 = vcmp.lt.s32.totalorder %v262, 17
        %v264 = vsel %vm263, %v246, %v254
        %v265 = vsel %vm263, %v248, %v256
        %v266 = vsel %vm263, %v250, %v258
        %v267 = vsel %vm263, %v252, %v260
        %v268 = vsel %vm263, %v254, %v246
        %v269 = vsel %vm263, %v256, %v248
        %v270 = vsel %vm263, %v258, %v250
        %v271 = vsel %vm263, %v260, %v252
        %v272 = vld [vmem:[%s3] sm:$0x3]
        %v274 = vperm.slane %v272, 0
        %v275 = vperm.slane %v272, 1
        %v278 = vmul.f32 %v268, %v274
        %v279 = vmul.f32 %v264, %v275
        %v280 = vmul.f32 %v269, %v274
        %v281 = vmul.f32 %v265, %v275
        %v282 = vmul.f32 %v270, %v274
        %v283 = vmul.f32 %v266, %v275
        %v284 = vmul.f32 %v271, %v274
        %v285 = vmul.f32 %v267, %v275
        %v286 = vpack.c.bf16 %v279, %v278
        %v287 = vpack.c.bf16 %v281, %v280
        %v288 = vpack.c.bf16 %v283, %v282
        %v289 = vpack.c.bf16 %v285, %v284
        %290 = vst [vmem:[#allocation2] sm:$0xff] %v286
        %291 = vst [vmem:[#allocation2 + $0x8] sm:$0xff] %v287
        %292 = vst [vmem:[#allocation2 + $0x10] sm:$0xff] %v288
        %293 = vst [vmem:[#allocation2 + $0x18] sm:$0xff] %v289
        %294 = vrot.lane.b32.xlu0 %v237, 16
        %v295 = vpop.permute.xlu0 %294
        %296 = vrot.lane.b32.xlu0 %v239, 16
        %v297 = vpop.permute.xlu0 %296
        %298 = vrot.lane.b32.xlu0 %v241, 16
        %v299 = vpop.permute.xlu0 %298
        %300 = vrot.lane.b32.xlu0 %v243, 16
        %v301 = vpop.permute.xlu0 %300
        %302 = vrot.lane.b32.xlu0 %v238, 16
        %v303 = vpop.permute.xlu0 %302
        %304 = vrot.lane.b32.xlu0 %v240, 16
        %v305 = vpop.permute.xlu0 %304
        %306 = vrot.lane.b32.xlu0 %v242, 16
        %v307 = vpop.permute.xlu0 %306
        %308 = vrot.lane.b32.xlu0 %v244, 16
        %v309 = vpop.permute.xlu0 %308
        %vm310 = vcmp.lt.s32.totalorder %v262, 16
        %v311 = vsel %vm310, %v295, %v303
        %v312 = vsel %vm310, %v297, %v305
        %v313 = vsel %vm310, %v299, %v307
        %v314 = vsel %vm310, %v301, %v309
        %v315 = vsel %vm310, %v303, %v295
        %v316 = vsel %vm310, %v305, %v297
        %v317 = vsel %vm310, %v307, %v299
        %v318 = vsel %vm310, %v309, %v301
        %s319 = scalar_lea.vmem %s3, 2
        %v320 = vld [vmem:[%s319] sm:$0x3]
        %v322 = vperm.slane %v320, 0
        %v323 = vperm.slane %v320, 1
        %v326 = vmul.f32 %v315, %v322
        %v327 = vmul.f32 %v311, %v323
        %v328 = vmul.f32 %v316, %v322
        %v329 = vmul.f32 %v312, %v323
        %v330 = vmul.f32 %v317, %v322
        %v331 = vmul.f32 %v313, %v323
        %v332 = vmul.f32 %v318, %v322
        %v333 = vmul.f32 %v314, %v323
        %v334 = vpack.c.bf16 %v327, %v326
        %v335 = vpack.c.bf16 %v329, %v328
        %v336 = vpack.c.bf16 %v331, %v330
        %v337 = vpack.c.bf16 %v333, %v332
        %338 = vst [vmem:[#allocation2 + $0x20] sm:$0xff] %v334
        %339 = vst [vmem:[#allocation2 + $0x28] sm:$0xff] %v335
        %340 = vst [vmem:[#allocation2 + $0x30] sm:$0xff] %v336
        %341 = vst [vmem:[#allocation2 + $0x38] sm:$0xff] %v337
        %342 = vrot.lane.b32.xlu0 %v237, 15
        %v343 = vpop.permute.xlu0 %342
        %344 = vrot.lane.b32.xlu0 %v239, 15
        %v345 = vpop.permute.xlu0 %344
        %346 = vrot.lane.b32.xlu0 %v241, 15
        %v347 = vpop.permute.xlu0 %346
        %348 = vrot.lane.b32.xlu0 %v243, 15
        %v349 = vpop.permute.xlu0 %348
        %350 = vrot.lane.b32.xlu0 %v238, 15
        %v351 = vpop.permute.xlu0 %350
        %352 = vrot.lane.b32.xlu0 %v240, 15
        %v353 = vpop.permute.xlu0 %352
        %354 = vrot.lane.b32.xlu0 %v242, 15
        %v355 = vpop.permute.xlu0 %354
        %356 = vrot.lane.b32.xlu0 %v244, 15
        %v357 = vpop.permute.xlu0 %356
        %vm358 = vcmp.lt.s32.totalorder %v262, 15
        %v359 = vsel %vm358, %v343, %v351
        %v360 = vsel %vm358, %v345, %v353
        %v361 = vsel %vm358, %v347, %v355
        %v362 = vsel %vm358, %v349, %v357
        %v363 = vsel %vm358, %v351, %v343
        %v364 = vsel %vm358, %v353, %v345
        %v365 = vsel %vm358, %v355, %v347
        %v366 = vsel %vm358, %v357, %v349
        %s367 = scalar_lea.vmem %s3, 4
        %v368 = vld [vmem:[%s367] sm:$0x3]
        %v370 = vperm.slane %v368, 0
        %v371 = vperm.slane %v368, 1
        %v374 = vmul.f32 %v363, %v370
        %v375 = vmul.f32 %v359, %v371
        %v376 = vmul.f32 %v364, %v370
        %v377 = vmul.f32 %v360, %v371
        %v378 = vmul.f32 %v365, %v370
        %v379 = vmul.f32 %v361, %v371
        %v380 = vmul.f32 %v366, %v370
        %v381 = vmul.f32 %v362, %v371
        %v382 = vpack.c.bf16 %v375, %v374
        %v383 = vpack.c.bf16 %v377, %v376
        %v384 = vpack.c.bf16 %v379, %v378
        %v385 = vpack.c.bf16 %v381, %v380
        %386 = vst [vmem:[#allocation2 + $0x40] sm:$0xff] %v382
        %387 = vst [vmem:[#allocation2 + $0x48] sm:$0xff] %v383
        %388 = vst [vmem:[#allocation2 + $0x50] sm:$0xff] %v384
        %389 = vst [vmem:[#allocation2 + $0x58] sm:$0xff] %v385
        %390 = vrot.lane.b32.xlu0 %v237, 1
        %v391 = vpop.permute.xlu0 %390
        %392 = vrot.lane.b32.xlu0 %v239, 1
        %v393 = vpop.permute.xlu0 %392
        %394 = vrot.lane.b32.xlu0 %v241, 1
        %v395 = vpop.permute.xlu0 %394
        %396 = vrot.lane.b32.xlu0 %v243, 1
        %v397 = vpop.permute.xlu0 %396
        %398 = vrot.lane.b32.xlu0 %v238, 1
        %v399 = vpop.permute.xlu0 %398
        %400 = vrot.lane.b32.xlu0 %v240, 1
        %v401 = vpop.permute.xlu0 %400
        %402 = vrot.lane.b32.xlu0 %v242, 1
        %v403 = vpop.permute.xlu0 %402
        %404 = vrot.lane.b32.xlu0 %v244, 1
        %v405 = vpop.permute.xlu0 %404
        %vm406 = vcmp.lt.s32.totalorder %v262, 1
        %v407 = vsel %vm406, %v391, %v399
        %v408 = vsel %vm406, %v393, %v401
        %v409 = vsel %vm406, %v395, %v403
        %v410 = vsel %vm406, %v397, %v405
        %v411 = vsel %vm406, %v399, %v391
        %v412 = vsel %vm406, %v401, %v393
        %v413 = vsel %vm406, %v403, %v395
        %v414 = vsel %vm406, %v405, %v397
        %s415 = scalar_lea.vmem %s3, 6
        %v416 = vld [vmem:[%s415] sm:$0x3]
        %v418 = vperm.slane %v416, 0
        %v419 = vperm.slane %v416, 1
        %v422 = vmul.f32 %v411, %v418
        %v423 = vmul.f32 %v407, %v419
        %v424 = vmul.f32 %v412, %v418
        %v425 = vmul.f32 %v408, %v419
        %v426 = vmul.f32 %v413, %v418
        %v427 = vmul.f32 %v409, %v419
        %v428 = vmul.f32 %v414, %v418
        %v429 = vmul.f32 %v410, %v419
        %v430 = vpack.c.bf16 %v423, %v422
        %v431 = vpack.c.bf16 %v425, %v424
        %v432 = vpack.c.bf16 %v427, %v426
        %v433 = vpack.c.bf16 %v429, %v428
        %434 = vst [vmem:[#allocation2 + $0x60] sm:$0xff] %v430
        %435 = vst [vmem:[#allocation2 + $0x68] sm:$0xff] %v431
        %436 = vst [vmem:[#allocation2 + $0x70] sm:$0xff] %v432
        %437 = vst [vmem:[#allocation2 + $0x78] sm:$0xff] %v433
        %s438 = scalar_lea.vmem %s3, 8
        %v439 = vld [vmem:[%s438] sm:$0x3]
        %v441 = vperm.slane %v439, 0
        %v442 = vperm.slane %v439, 1
        %v445 = vmul.f32 %v237, %v441
        %v446 = vmul.f32 %v238, %v442
        %v447 = vmul.f32 %v239, %v441
        %v448 = vmul.f32 %v240, %v442
        %v449 = vmul.f32 %v241, %v441
        %v450 = vmul.f32 %v242, %v442
        %v451 = vmul.f32 %v243, %v441
        %v452 = vmul.f32 %v244, %v442
        %v453 = vpack.c.bf16 %v446, %v445
        %v454 = vpack.c.bf16 %v448, %v447
        %v455 = vpack.c.bf16 %v450, %v449
        %v456 = vpack.c.bf16 %v452, %v451
        %457 = vst [vmem:[#allocation2 + $0x80] sm:$0xff] %v453
        %458 = vst [vmem:[#allocation2 + $0x88] sm:$0xff] %v454
        %459 = vst [vmem:[#allocation2 + $0x90] sm:$0xff] %v455
        %460 = vst [vmem:[#allocation2 + $0x98] sm:$0xff] %v456
        %461 = vrot.lane.b32.xlu0 %v237, 127
        %v462 = vpop.permute.xlu0 %461
        %463 = vrot.lane.b32.xlu0 %v239, 127
        %v464 = vpop.permute.xlu0 %463
        %465 = vrot.lane.b32.xlu0 %v241, 127
        %v466 = vpop.permute.xlu0 %465
        %467 = vrot.lane.b32.xlu0 %v243, 127
        %v468 = vpop.permute.xlu0 %467
        %469 = vrot.lane.b32.xlu0 %v238, 127
        %v470 = vpop.permute.xlu0 %469
        %471 = vrot.lane.b32.xlu0 %v240, 127
        %v472 = vpop.permute.xlu0 %471
        %473 = vrot.lane.b32.xlu0 %v242, 127
        %v474 = vpop.permute.xlu0 %473
        %475 = vrot.lane.b32.xlu0 %v244, 127
        %v476 = vpop.permute.xlu0 %475
        %vm477 = vcmp.lt.s32.totalorder %v262, 127
        %v478 = vsel %vm477, %v462, %v470
        %v479 = vsel %vm477, %v464, %v472
        %v480 = vsel %vm477, %v466, %v474
        %v481 = vsel %vm477, %v468, %v476
        %v482 = vsel %vm477, %v470, %v462
        %v483 = vsel %vm477, %v472, %v464
        %v484 = vsel %vm477, %v474, %v466
        %v485 = vsel %vm477, %v476, %v468
        %s486 = scalar_lea.vmem %s3, 10
        %v487 = vld [vmem:[%s486] sm:$0x3]
        %v489 = vperm.slane %v487, 0
        %v490 = vperm.slane %v487, 1
        %v493 = vmul.f32 %v478, %v489
        %v494 = vmul.f32 %v482, %v490
        %v495 = vmul.f32 %v479, %v489
        %v496 = vmul.f32 %v483, %v490
        %v497 = vmul.f32 %v480, %v489
        %v498 = vmul.f32 %v484, %v490
        %v499 = vmul.f32 %v481, %v489
        %v500 = vmul.f32 %v485, %v490
        %v501 = vpack.c.bf16 %v494, %v493
        %v502 = vpack.c.bf16 %v496, %v495
        %v503 = vpack.c.bf16 %v498, %v497
        %v504 = vpack.c.bf16 %v500, %v499
        %505 = vst [vmem:[#allocation2 + $0xa0] sm:$0xff] %v501
        %506 = vst [vmem:[#allocation2 + $0xa8] sm:$0xff] %v502
        %507 = vst [vmem:[#allocation2 + $0xb0] sm:$0xff] %v503
        %508 = vst [vmem:[#allocation2 + $0xb8] sm:$0xff] %v504
        %509 = vrot.lane.b32.xlu0 %v237, 113
        %v510 = vpop.permute.xlu0 %509
        %511 = vrot.lane.b32.xlu0 %v239, 113
        %v512 = vpop.permute.xlu0 %511
        %513 = vrot.lane.b32.xlu0 %v241, 113
        %v514 = vpop.permute.xlu0 %513
        %515 = vrot.lane.b32.xlu0 %v243, 113
        %v516 = vpop.permute.xlu0 %515
        %517 = vrot.lane.b32.xlu0 %v238, 113
        %v518 = vpop.permute.xlu0 %517
        %519 = vrot.lane.b32.xlu0 %v240, 113
        %v520 = vpop.permute.xlu0 %519
        %521 = vrot.lane.b32.xlu0 %v242, 113
        %v522 = vpop.permute.xlu0 %521
        %523 = vrot.lane.b32.xlu0 %v244, 113
        %v524 = vpop.permute.xlu0 %523
        %vm525 = vcmp.lt.s32.totalorder %v262, 113
        %v526 = vsel %vm525, %v510, %v518
        %v527 = vsel %vm525, %v512, %v520
        %v528 = vsel %vm525, %v514, %v522
        %v529 = vsel %vm525, %v516, %v524
        %v530 = vsel %vm525, %v518, %v510
        %v531 = vsel %vm525, %v520, %v512
        %v532 = vsel %vm525, %v522, %v514
        %v533 = vsel %vm525, %v524, %v516
        %s534 = scalar_lea.vmem %s3, 12
        %v535 = vld [vmem:[%s534] sm:$0x3]
        %v537 = vperm.slane %v535, 0
        %v538 = vperm.slane %v535, 1
        %v541 = vmul.f32 %v526, %v537
        %v542 = vmul.f32 %v530, %v538
        %v543 = vmul.f32 %v527, %v537
        %v544 = vmul.f32 %v531, %v538
        %v545 = vmul.f32 %v528, %v537
        %v546 = vmul.f32 %v532, %v538
        %v547 = vmul.f32 %v529, %v537
        %v548 = vmul.f32 %v533, %v538
        %v549 = vpack.c.bf16 %v542, %v541
        %v550 = vpack.c.bf16 %v544, %v543
        %v551 = vpack.c.bf16 %v546, %v545
        %v552 = vpack.c.bf16 %v548, %v547
        %553 = vst [vmem:[#allocation2 + $0xc0] sm:$0xff] %v549
        %554 = vst [vmem:[#allocation2 + $0xc8] sm:$0xff] %v550
        %555 = vst [vmem:[#allocation2 + $0xd0] sm:$0xff] %v551
        %556 = vst [vmem:[#allocation2 + $0xd8] sm:$0xff] %v552
        %557 = vrot.lane.b32.xlu0 %v237, 112
        %v558 = vpop.permute.xlu0 %557
        %559 = vrot.lane.b32.xlu0 %v239, 112
        %v560 = vpop.permute.xlu0 %559
        %561 = vrot.lane.b32.xlu0 %v241, 112
        %v562 = vpop.permute.xlu0 %561
        %563 = vrot.lane.b32.xlu0 %v243, 112
        %v564 = vpop.permute.xlu0 %563
        %565 = vrot.lane.b32.xlu0 %v238, 112
        %v566 = vpop.permute.xlu0 %565
        %567 = vrot.lane.b32.xlu0 %v240, 112
        %v568 = vpop.permute.xlu0 %567
        %569 = vrot.lane.b32.xlu0 %v242, 112
        %v570 = vpop.permute.xlu0 %569
        %571 = vrot.lane.b32.xlu0 %v244, 112
        %v572 = vpop.permute.xlu0 %571
        %vm573 = vcmp.lt.s32.totalorder %v262, 112
        %v574 = vsel %vm573, %v558, %v566
        %v575 = vsel %vm573, %v560, %v568
        %v576 = vsel %vm573, %v562, %v570
        %v577 = vsel %vm573, %v564, %v572
        %v578 = vsel %vm573, %v566, %v558
        %v579 = vsel %vm573, %v568, %v560
        %v580 = vsel %vm573, %v570, %v562
        %v581 = vsel %vm573, %v572, %v564
        %s582 = scalar_lea.vmem %s3, 14
        %v583 = vld [vmem:[%s582] sm:$0x3]
        %v585 = vperm.slane %v583, 0
        %v586 = vperm.slane %v583, 1
        %v589 = vmul.f32 %v574, %v585
        %v590 = vmul.f32 %v578, %v586
        %v591 = vmul.f32 %v575, %v585
        %v592 = vmul.f32 %v579, %v586
        %v593 = vmul.f32 %v576, %v585
        %v594 = vmul.f32 %v580, %v586
        %v595 = vmul.f32 %v577, %v585
        %v596 = vmul.f32 %v581, %v586
        %v597 = vpack.c.bf16 %v590, %v589
        %v598 = vpack.c.bf16 %v592, %v591
        %v599 = vpack.c.bf16 %v594, %v593
        %v600 = vpack.c.bf16 %v596, %v595
        %601 = vst [vmem:[#allocation2 + $0xe0] sm:$0xff] %v597
        %602 = vst [vmem:[#allocation2 + $0xe8] sm:$0xff] %v598
        %603 = vst [vmem:[#allocation2 + $0xf0] sm:$0xff] %v599
        %604 = vst [vmem:[#allocation2 + $0xf8] sm:$0xff] %v600
        %605 = vrot.lane.b32.xlu0 %v237, 111
        %v606 = vpop.permute.xlu0 %605
        %607 = vrot.lane.b32.xlu0 %v239, 111
        %v608 = vpop.permute.xlu0 %607
        %609 = vrot.lane.b32.xlu0 %v241, 111
        %v610 = vpop.permute.xlu0 %609
        %611 = vrot.lane.b32.xlu0 %v243, 111
        %v612 = vpop.permute.xlu0 %611
        %613 = vrot.lane.b32.xlu0 %v238, 111
        %v614 = vpop.permute.xlu0 %613
        %615 = vrot.lane.b32.xlu0 %v240, 111
        %v616 = vpop.permute.xlu0 %615
        %617 = vrot.lane.b32.xlu0 %v242, 111
        %v618 = vpop.permute.xlu0 %617
        %619 = vrot.lane.b32.xlu0 %v244, 111
        %v620 = vpop.permute.xlu0 %619
        %vm621 = vcmp.lt.s32.totalorder %v262, 111
        %v622 = vsel %vm621, %v606, %v614
        %v623 = vsel %vm621, %v608, %v616
        %v624 = vsel %vm621, %v610, %v618
        %v625 = vsel %vm621, %v612, %v620
        %v626 = vsel %vm621, %v614, %v606
        %v627 = vsel %vm621, %v616, %v608
        %v628 = vsel %vm621, %v618, %v610
        %v629 = vsel %vm621, %v620, %v612
        %s630 = scalar_lea.vmem %s3, 16
        %v631 = vld [vmem:[%s630] sm:$0x3]
        %v633 = vperm.slane %v631, 0
        %v634 = vperm.slane %v631, 1
        %v637 = vmul.f32 %v622, %v633
        %v638 = vmul.f32 %v626, %v634
        %v639 = vmul.f32 %v623, %v633
        %v640 = vmul.f32 %v627, %v634
        %v641 = vmul.f32 %v624, %v633
        %v642 = vmul.f32 %v628, %v634
        %v643 = vmul.f32 %v625, %v633
        %v644 = vmul.f32 %v629, %v634
        %v645 = vpack.c.bf16 %v638, %v637
        %v646 = vpack.c.bf16 %v640, %v639
        %v647 = vpack.c.bf16 %v642, %v641
        %v648 = vpack.c.bf16 %v644, %v643
        %649 = vst [vmem:[#allocation2 + $0x100] sm:$0xff] %v645
        %650 = vst [vmem:[#allocation2 + $0x108] sm:$0xff] %v646
        %651 = vst [vmem:[#allocation2 + $0x110] sm:$0xff] %v647
        %652 = vst [vmem:[#allocation2 + $0x118] sm:$0xff] %v648
        %v653 = vld [vmem:[%s1] sm:$0xff]
        %v654 = vld [vmem:[%s1 + $0x8] sm:$0xf]
        %v655 = vld [vmem:[%s1 + $0xc] sm:$0xff]
        %v656 = vld [vmem:[%s1 + $0x14] sm:$0xf]
        %v657 = vld [vmem:[#allocation2] sm:$0xff]
        %v658 = vld [vmem:[#allocation2 + $0x8] sm:$0xff]
        %v659 = vld [vmem:[#allocation2 + $0x10] sm:$0xff]
        %v660 = vld [vmem:[#allocation2 + $0x18] sm:$0xff]
        %v661 = vld [vmem:[#allocation2 + $0x20] sm:$0xff]
        %v662 = vld [vmem:[#allocation2 + $0x28] sm:$0xff]
        %v663 = vld [vmem:[#allocation2 + $0x30] sm:$0xff]
        %v664 = vld [vmem:[#allocation2 + $0x38] sm:$0xff]
        %v665 = vld [vmem:[#allocation2 + $0x40] sm:$0xff]
        %v666 = vld [vmem:[#allocation2 + $0x48] sm:$0xff]
        %v667 = vld [vmem:[#allocation2 + $0x50] sm:$0xff]
        %v668 = vld [vmem:[#allocation2 + $0x58] sm:$0xff]
        %v669 = vld [vmem:[#allocation2 + $0x60] sm:$0xff]
        %v670 = vld [vmem:[#allocation2 + $0x68] sm:$0xff]
        %v671 = vld [vmem:[#allocation2 + $0x70] sm:$0xff]
        %v672 = vld [vmem:[#allocation2 + $0x78] sm:$0xff]
        %v673 = vld [vmem:[#allocation2 + $0x80] sm:$0xff]
        %v674 = vld [vmem:[#allocation2 + $0x88] sm:$0xff]
        %v675 = vld [vmem:[#allocation2 + $0x90] sm:$0xff]
        %v676 = vld [vmem:[#allocation2 + $0x98] sm:$0xff]
        %v677 = vld [vmem:[#allocation2 + $0xa0] sm:$0xff]
        %v678 = vld [vmem:[#allocation2 + $0xa8] sm:$0xff]
        %v679 = vld [vmem:[#allocation2 + $0xb0] sm:$0xff]
        %v680 = vld [vmem:[#allocation2 + $0xb8] sm:$0xff]
        %v681 = vld [vmem:[#allocation2 + $0xc0] sm:$0xff]
        %v682 = vld [vmem:[#allocation2 + $0xc8] sm:$0xff]
        %v683 = vld [vmem:[#allocation2 + $0xd0] sm:$0xff]
        %v684 = vld [vmem:[#allocation2 + $0xd8] sm:$0xff]
        %v685 = vld [vmem:[#allocation2 + $0xe0] sm:$0xff]
        %v686 = vld [vmem:[#allocation2 + $0xe8] sm:$0xff]
        %v687 = vld [vmem:[#allocation2 + $0xf0] sm:$0xff]
        %v688 = vld [vmem:[#allocation2 + $0xf8] sm:$0xff]
        %v689 = vld [vmem:[#allocation2 + $0x100] sm:$0xff]
        %v690 = vld [vmem:[#allocation2 + $0x108] sm:$0xff]
        %v691 = vld [vmem:[#allocation2 + $0x110] sm:$0xff]
        %v692 = vld [vmem:[#allocation2 + $0x118] sm:$0xff]
        %v697 = vunpack.c.l.b16 %v653
        %v698 = vunpack.c.h.b16 %v653
        %v699 = vunpack.c.l.b16 %v654
        %v700 = vunpack.c.l.b16 %v655
        %v701 = vunpack.c.h.b16 %v655
        %v702 = vunpack.c.l.b16 %v656
        %v703 = vpack.c.b16 %v700, %v697
        %v704 = vpack.c.b16 %v701, %v698
        %v705 = vpack.c.b16 %v702, %v699
        %v744 = vunpack.c.l.b16 %v657
        %v745 = vunpack.c.h.b16 %v657
        %v746 = vunpack.c.l.b16 %v658
        %v747 = vunpack.c.h.b16 %v658
        %v748 = vunpack.c.l.b16 %v659
        %v749 = vunpack.c.h.b16 %v659
        %v750 = vunpack.c.l.b16 %v660
        %v751 = vunpack.c.h.b16 %v660
        %v752 = vunpack.c.l.b16 %v661
        %v753 = vunpack.c.h.b16 %v661
        %v754 = vunpack.c.l.b16 %v662
        %v755 = vunpack.c.h.b16 %v662
        %v756 = vunpack.c.l.b16 %v663
        %v757 = vunpack.c.h.b16 %v663
        %v758 = vunpack.c.l.b16 %v664
        %v759 = vunpack.c.h.b16 %v664
        %v760 = vunpack.c.l.b16 %v665
        %v761 = vunpack.c.h.b16 %v665
        %v762 = vunpack.c.l.b16 %v666
        %v763 = vunpack.c.h.b16 %v666
        %v764 = vunpack.c.l.b16 %v667
        %v765 = vunpack.c.h.b16 %v667
        %v766 = vunpack.c.l.b16 %v668
        %v767 = vunpack.c.h.b16 %v668
        %v768 = vunpack.c.l.b16 %v669
        %v769 = vunpack.c.h.b16 %v669
        %v770 = vunpack.c.l.b16 %v670
        %v771 = vunpack.c.h.b16 %v670
        %v772 = vunpack.c.l.b16 %v671
        %v773 = vunpack.c.h.b16 %v671
        %v774 = vunpack.c.l.b16 %v672
        %v775 = vunpack.c.h.b16 %v672
        %v776 = vunpack.c.l.b16 %v673
        %v777 = vunpack.c.h.b16 %v673
        %v778 = vunpack.c.l.b16 %v674
        %v779 = vunpack.c.h.b16 %v674
        %v780 = vunpack.c.l.b16 %v675
        %v781 = vunpack.c.h.b16 %v675
        %v782 = vunpack.c.l.b16 %v676
        %v783 = vunpack.c.h.b16 %v676
        %v784 = vunpack.c.l.b16 %v677
        %v785 = vunpack.c.h.b16 %v677
        %v786 = vunpack.c.l.b16 %v678
        %v787 = vunpack.c.h.b16 %v678
        %v788 = vunpack.c.l.b16 %v679
        %v789 = vunpack.c.h.b16 %v679
        %v790 = vunpack.c.l.b16 %v680
        %v791 = vunpack.c.h.b16 %v680
        %v792 = vunpack.c.l.b16 %v681
        %v793 = vunpack.c.h.b16 %v681
        %v794 = vunpack.c.l.b16 %v682
        %v795 = vunpack.c.h.b16 %v682
        %v796 = vunpack.c.l.b16 %v683
        %v797 = vunpack.c.h.b16 %v683
        %v798 = vunpack.c.l.b16 %v684
        %v799 = vunpack.c.h.b16 %v684
        %v800 = vunpack.c.l.b16 %v685
        %v801 = vunpack.c.h.b16 %v685
        %v802 = vunpack.c.l.b16 %v686
        %v803 = vunpack.c.h.b16 %v686
        %v804 = vunpack.c.l.b16 %v687
        %v805 = vunpack.c.h.b16 %v687
        %v806 = vunpack.c.l.b16 %v688
        %v807 = vunpack.c.h.b16 %v688
        %v808 = vunpack.c.l.b16 %v689
        %v809 = vunpack.c.h.b16 %v689
        %v810 = vunpack.c.l.b16 %v690
        %v811 = vunpack.c.h.b16 %v690
        %v812 = vunpack.c.l.b16 %v691
        %v813 = vunpack.c.h.b16 %v691
        %v814 = vunpack.c.l.b16 %v692
        %v815 = vunpack.c.h.b16 %v692
        %v816 = vpack.c.b16 %v746, %v744
        %v817 = vpack.c.b16 %v747, %v745
        %v818 = vpack.c.b16 %v750, %v748
        %v819 = vpack.c.b16 %v751, %v749
        %v820 = vpack.c.b16 %v754, %v752
        %v821 = vpack.c.b16 %v755, %v753
        %v822 = vpack.c.b16 %v758, %v756
        %v823 = vpack.c.b16 %v759, %v757
        %v824 = vpack.c.b16 %v762, %v760
        %v825 = vpack.c.b16 %v763, %v761
        %v826 = vpack.c.b16 %v766, %v764
        %v827 = vpack.c.b16 %v767, %v765
        %v828 = vpack.c.b16 %v770, %v768
        %v829 = vpack.c.b16 %v771, %v769
        %v830 = vpack.c.b16 %v774, %v772
        %v831 = vpack.c.b16 %v775, %v773
        %v832 = vpack.c.b16 %v778, %v776
        %v833 = vpack.c.b16 %v779, %v777
        %v834 = vpack.c.b16 %v782, %v780
        %v835 = vpack.c.b16 %v783, %v781
        %v836 = vpack.c.b16 %v786, %v784
        %v837 = vpack.c.b16 %v787, %v785
        %v838 = vpack.c.b16 %v790, %v788
        %v839 = vpack.c.b16 %v791, %v789
        %v840 = vpack.c.b16 %v794, %v792
        %v841 = vpack.c.b16 %v795, %v793
        %v842 = vpack.c.b16 %v798, %v796
        %v843 = vpack.c.b16 %v799, %v797
        %v844 = vpack.c.b16 %v802, %v800
        %v845 = vpack.c.b16 %v803, %v801
        %v846 = vpack.c.b16 %v806, %v804
        %v847 = vpack.c.b16 %v807, %v805
        %v848 = vpack.c.b16 %v810, %v808
        %v849 = vpack.c.b16 %v811, %v809
        %v850 = vpack.c.b16 %v814, %v812
        %v851 = vpack.c.b16 %v815, %v813
        %vm888 = vcmask 261120
        %v890 = vsel %vm888, %v705, 0
        %892 = vmatpush.bf16.msra.mxu0 %v830
        %893 = vmatpush.bf16.msra.mxu0 %v828
        %894 = vmatpush.bf16.msra.mxu0 %v826
        %895 = vmatpush.bf16.msra.mxu0 %v824
        %896 = vmatpush.bf16.msra.mxu0 %v822
        %897 = vmatpush.bf16.msra.mxu0 %v820
        %898 = vmatpush.bf16.msra.mxu0 %v818
        %899 = vmatpush.bf16.msra.mxu0 %v816
        %900 = vmatmul.bf16.gmra.mxu0 %v703
        %v901 = vpop.f32.mrf.mxu0
        %v902 = vadd.f32 0.0, %v901
        %v903 = vpop.f32.mrf.mxu0
        %v904 = vadd.f32 0.0, %v903
        %905 = vdwg.mxu0
        %906 = vmatpush.bf16.msra.mxu0 %v846
        %907 = vmatpush.bf16.msra.mxu0 %v844
        %908 = vmatpush.bf16.msra.mxu0 %v842
        %909 = vmatpush.bf16.msra.mxu0 %v840
        %910 = vmatpush.bf16.msra.mxu0 %v838
        %911 = vmatpush.bf16.msra.mxu0 %v836
        %912 = vmatpush.bf16.msra.mxu0 %v834
        %913 = vmatpush.bf16.msra.mxu0 %v832
        %914 = vmatmul.bf16.gmra.mxu0 %v704
        %v915 = vpop.f32.mrf.mxu0
        %v916 = vadd.f32 %v902, %v915
        %v917 = vpop.f32.mrf.mxu0
        %v918 = vadd.f32 %v904, %v917
        %919 = vdwg.mxu0
        %920 = vmatpush.bf16.msra.mxu0 0
        %921 = vmatpush.bf16.msra.mxu0 0
        %922 = vmatpush.bf16.msra.mxu0 0
        %923 = vmatpush.bf16.msra.mxu0 0
        %924 = vmatpush.bf16.msra.mxu0 0
        %925 = vmatpush.bf16.msra.mxu0 0
        %926 = vmatpush.bf16.msra.mxu0 %v850
        %927 = vmatpush.bf16.msra.mxu0 %v848
        %928 = vmatmul.bf16.gmra.mxu0 %v890
        %v929 = vpop.f32.mrf.mxu0
        %v930 = vadd.f32 %v916, %v929
        %v931 = vpop.f32.mrf.mxu0
        %v932 = vadd.f32 %v918, %v931
        %933 = vdwg.mxu0
        %934 = vmatpush.bf16.msra.mxu0 %v831
        %935 = vmatpush.bf16.msra.mxu0 %v829
        %936 = vmatpush.bf16.msra.mxu0 %v827
        %937 = vmatpush.bf16.msra.mxu0 %v825
        %938 = vmatpush.bf16.msra.mxu0 %v823
        %939 = vmatpush.bf16.msra.mxu0 %v821
        %940 = vmatpush.bf16.msra.mxu0 %v819
        %941 = vmatpush.bf16.msra.mxu0 %v817
        %942 = vmatmul.bf16.gmra.mxu0 %v703
        %v943 = vpop.f32.mrf.mxu0
        %v944 = vadd.f32 0.0, %v943
        %v945 = vpop.f32.mrf.mxu0
        %v946 = vadd.f32 0.0, %v945
        %947 = vdwg.mxu0
        %948 = vmatpush.bf16.msra.mxu0 %v847
        %949 = vmatpush.bf16.msra.mxu0 %v845
        %950 = vmatpush.bf16.msra.mxu0 %v843
        %951 = vmatpush.bf16.msra.mxu0 %v841
        %952 = vmatpush.bf16.msra.mxu0 %v839
        %953 = vmatpush.bf16.msra.mxu0 %v837
        %954 = vmatpush.bf16.msra.mxu0 %v835
        %955 = vmatpush.bf16.msra.mxu0 %v833
        %956 = vmatmul.bf16.gmra.mxu0 %v704
        %v957 = vpop.f32.mrf.mxu0
        %v958 = vadd.f32 %v944, %v957
        %v959 = vpop.f32.mrf.mxu0
        %v960 = vadd.f32 %v946, %v959
        %961 = vdwg.mxu0
        %962 = vmatpush.bf16.msra.mxu0 0
        %963 = vmatpush.bf16.msra.mxu0 0
        %964 = vmatpush.bf16.msra.mxu0 0
        %965 = vmatpush.bf16.msra.mxu0 0
        %966 = vmatpush.bf16.msra.mxu0 0
        %967 = vmatpush.bf16.msra.mxu0 0
        %968 = vmatpush.bf16.msra.mxu0 %v851
        %969 = vmatpush.bf16.msra.mxu0 %v849
        %970 = vmatmul.bf16.gmra.mxu0 %v890
        %v971 = vpop.f32.mrf.mxu0
        %v972 = vadd.f32 %v958, %v971
        %v973 = vpop.f32.mrf.mxu0
        %v974 = vadd.f32 %v960, %v973
        %975 = vdwg.mxu0
        %v976 = vmax.f32 %v930, 0.0
        %v977 = vmax.f32 %v972, 0.0
        %v978 = vmax.f32 %v932, 0.0
        %v979 = vmax.f32 %v974, 0.0
        %v980 = vpack.c.bf16 %v978, %v976
        %v981 = vpack.c.bf16 %v979, %v977
        %v982 = vld [vmem:[%s2] sm:$0xf]
        %v983 = vld [vmem:[%s2 + $0x4] sm:$0xf]
        %v984 = vld [vmem:[%s2 + $0x8] sm:$0xf]
        %v985 = vld [vmem:[%s2 + $0xc] sm:$0xf]
        %v990 = vunpack.c.l.b16 %v982
        %v991 = vunpack.c.l.b16 %v983
        %v992 = vunpack.c.l.b16 %v984
        %v993 = vunpack.c.l.b16 %v985
        %v994 = vpack.c.b16 %v991, %v990
        %v995 = vpack.c.b16 %v993, %v992
        %vm996 = vcmask 130048
        %v998 = vsel %vm996, %v994, 0
        %v1001 = vsel %vm996, %v995, 0
        %1003 = vmatpush.bf16.msra.mxu0 0
        %1004 = vmatpush.bf16.msra.mxu0 0
        %1005 = vmatpush.bf16.msra.mxu0 0
        %1006 = vmatpush.bf16.msra.mxu0 0
        %1007 = vmatpush.bf16.msra.mxu0 0
        %1008 = vmatpush.bf16.msra.mxu0 0
        %1009 = vmatpush.bf16.msra.mxu0 0
        %1010 = vmatpush.bf16.msra.mxu0 %v980
        %1011 = vmatmul.bf16.gmra.mxu0 %v998
        %v1012 = vpop.f32.mrf.mxu0
        %v1013 = vadd.f32 0.0, %v1012
        %v1014 = vpop.f32.mrf.mxu0
        %v1015 = vadd.f32 0.0, %v1014
        %1016 = vmatmul.bf16.gmra.mxu0 %v1001
        %v1017 = vpop.f32.mrf.mxu0
        %v1018 = vadd.f32 0.0, %v1017
        %v1019 = vpop.f32.mrf.mxu0
        %v1020 = vadd.f32 0.0, %v1019
        %1021 = vdwg.mxu0
        %1022 = vmatpush.bf16.msra.mxu0 0
        %1023 = vmatpush.bf16.msra.mxu0 0
        %1024 = vmatpush.bf16.msra.mxu0 0
        %1025 = vmatpush.bf16.msra.mxu0 0
        %1026 = vmatpush.bf16.msra.mxu0 0
        %1027 = vmatpush.bf16.msra.mxu0 0
        %1028 = vmatpush.bf16.msra.mxu0 0
        %1029 = vmatpush.bf16.msra.mxu0 %v981
        %1030 = vmatmul.bf16.gmra.mxu0 %v998
        %v1031 = vpop.f32.mrf.mxu0
        %v1032 = vadd.f32 0.0, %v1031
        %v1033 = vpop.f32.mrf.mxu0
        %v1034 = vadd.f32 0.0, %v1033
        %1035 = vmatmul.bf16.gmra.mxu0 %v1001
        %v1036 = vpop.f32.mrf.mxu0
        %v1037 = vadd.f32 0.0, %v1036
        %v1038 = vpop.f32.mrf.mxu0
        %v1039 = vadd.f32 0.0, %v1038
        %1040 = vdwg.mxu0
        %v1041 = vadd.f32 %v229, %v1013
        %v1042 = vadd.f32 %v230, %v1032
        %v1043 = vadd.f32 %v231, %v1015
        %v1044 = vadd.f32 %v232, %v1034
        %v1045 = vadd.f32 %v233, %v1018
        %v1046 = vadd.f32 %v234, %v1037
        %v1047 = vadd.f32 %v235, %v1020
        %v1048 = vadd.f32 %v236, %v1039
        %v1049 = vmax.f32 %v1041, 0.0
        %v1050 = vmax.f32 %v1042, 0.0
        %v1051 = vmax.f32 %v1043, 0.0
        %v1052 = vmax.f32 %v1044, 0.0
        %v1053 = vmax.f32 %v1045, 0.0
        %v1054 = vmax.f32 %v1046, 0.0
        %v1055 = vmax.f32 %v1047, 0.0
        %v1056 = vmax.f32 %v1048, 0.0
        %1057 = vrot.lane.b32.xlu0 %v1049, 17
        %v1058 = vpop.permute.xlu0 %1057
        %1059 = vrot.lane.b32.xlu0 %v1051, 17
        %v1060 = vpop.permute.xlu0 %1059
        %1061 = vrot.lane.b32.xlu0 %v1053, 17
        %v1062 = vpop.permute.xlu0 %1061
        %1063 = vrot.lane.b32.xlu0 %v1055, 17
        %v1064 = vpop.permute.xlu0 %1063
        %1065 = vrot.lane.b32.xlu0 %v1050, 17
        %v1066 = vpop.permute.xlu0 %1065
        %1067 = vrot.lane.b32.xlu0 %v1052, 17
        %v1068 = vpop.permute.xlu0 %1067
        %1069 = vrot.lane.b32.xlu0 %v1054, 17
        %v1070 = vpop.permute.xlu0 %1069
        %1071 = vrot.lane.b32.xlu0 %v1056, 17
        %v1072 = vpop.permute.xlu0 %1071
        %v1073 = vsel %vm263, %v1058, %v1066
        %v1074 = vsel %vm263, %v1060, %v1068
        %v1075 = vsel %vm263, %v1062, %v1070
        %v1076 = vsel %vm263, %v1064, %v1072
        %v1077 = vsel %vm263, %v1066, %v1058
        %v1078 = vsel %vm263, %v1068, %v1060
        %v1079 = vsel %vm263, %v1070, %v1062
        %v1080 = vsel %vm263, %v1072, %v1064
        %v1081 = vld [vmem:[%s3] sm:$0x3]
        %v1083 = vperm.slane %v1081, 0
        %v1084 = vperm.slane %v1081, 1
        %v1087 = vmul.f32 %v1077, %v1083
        %v1088 = vmul.f32 %v1073, %v1084
        %v1089 = vmul.f32 %v1078, %v1083
        %v1090 = vmul.f32 %v1074, %v1084
        %v1091 = vmul.f32 %v1079, %v1083
        %v1092 = vmul.f32 %v1075, %v1084
        %v1093 = vmul.f32 %v1080, %v1083
        %v1094 = vmul.f32 %v1076, %v1084
        %v1095 = vpack.c.bf16 %v1088, %v1087
        %v1096 = vpack.c.bf16 %v1090, %v1089
        %v1097 = vpack.c.bf16 %v1092, %v1091
        %v1098 = vpack.c.bf16 %v1094, %v1093
        %1099 = vst [vmem:[#allocation2] sm:$0xff] %v1095
        %1100 = vst [vmem:[#allocation2 + $0x8] sm:$0xff] %v1096
        %1101 = vst [vmem:[#allocation2 + $0x10] sm:$0xff] %v1097
        %1102 = vst [vmem:[#allocation2 + $0x18] sm:$0xff] %v1098
        %1103 = vrot.lane.b32.xlu0 %v1049, 16
        %v1104 = vpop.permute.xlu0 %1103
        %1105 = vrot.lane.b32.xlu0 %v1051, 16
        %v1106 = vpop.permute.xlu0 %1105
        %1107 = vrot.lane.b32.xlu0 %v1053, 16
        %v1108 = vpop.permute.xlu0 %1107
        %1109 = vrot.lane.b32.xlu0 %v1055, 16
        %v1110 = vpop.permute.xlu0 %1109
        %1111 = vrot.lane.b32.xlu0 %v1050, 16
        %v1112 = vpop.permute.xlu0 %1111
        %1113 = vrot.lane.b32.xlu0 %v1052, 16
        %v1114 = vpop.permute.xlu0 %1113
        %1115 = vrot.lane.b32.xlu0 %v1054, 16
        %v1116 = vpop.permute.xlu0 %1115
        %1117 = vrot.lane.b32.xlu0 %v1056, 16
        %v1118 = vpop.permute.xlu0 %1117
        %v1119 = vsel %vm310, %v1104, %v1112
        %v1120 = vsel %vm310, %v1106, %v1114
        %v1121 = vsel %vm310, %v1108, %v1116
        %v1122 = vsel %vm310, %v1110, %v1118
        %v1123 = vsel %vm310, %v1112, %v1104
        %v1124 = vsel %vm310, %v1114, %v1106
        %v1125 = vsel %vm310, %v1116, %v1108
        %v1126 = vsel %vm310, %v1118, %v1110
        %v1127 = vld [vmem:[%s319] sm:$0x3]
        %v1129 = vperm.slane %v1127, 0
        %v1130 = vperm.slane %v1127, 1
        %v1133 = vmul.f32 %v1123, %v1129
        %v1134 = vmul.f32 %v1119, %v1130
        %v1135 = vmul.f32 %v1124, %v1129
        %v1136 = vmul.f32 %v1120, %v1130
        %v1137 = vmul.f32 %v1125, %v1129
        %v1138 = vmul.f32 %v1121, %v1130
        %v1139 = vmul.f32 %v1126, %v1129
        %v1140 = vmul.f32 %v1122, %v1130
        %v1141 = vpack.c.bf16 %v1134, %v1133
        %v1142 = vpack.c.bf16 %v1136, %v1135
        %v1143 = vpack.c.bf16 %v1138, %v1137
        %v1144 = vpack.c.bf16 %v1140, %v1139
        %1145 = vst [vmem:[#allocation2 + $0x20] sm:$0xff] %v1141
        %1146 = vst [vmem:[#allocation2 + $0x28] sm:$0xff] %v1142
        %1147 = vst [vmem:[#allocation2 + $0x30] sm:$0xff] %v1143
        %1148 = vst [vmem:[#allocation2 + $0x38] sm:$0xff] %v1144
        %1149 = vrot.lane.b32.xlu0 %v1049, 15
        %v1150 = vpop.permute.xlu0 %1149
        %1151 = vrot.lane.b32.xlu0 %v1051, 15
        %v1152 = vpop.permute.xlu0 %1151
        %1153 = vrot.lane.b32.xlu0 %v1053, 15
        %v1154 = vpop.permute.xlu0 %1153
        %1155 = vrot.lane.b32.xlu0 %v1055, 15
        %v1156 = vpop.permute.xlu0 %1155
        %1157 = vrot.lane.b32.xlu0 %v1050, 15
        %v1158 = vpop.permute.xlu0 %1157
        %1159 = vrot.lane.b32.xlu0 %v1052, 15
        %v1160 = vpop.permute.xlu0 %1159
        %1161 = vrot.lane.b32.xlu0 %v1054, 15
        %v1162 = vpop.permute.xlu0 %1161
        %1163 = vrot.lane.b32.xlu0 %v1056, 15
        %v1164 = vpop.permute.xlu0 %1163
        %v1165 = vsel %vm358, %v1150, %v1158
        %v1166 = vsel %vm358, %v1152, %v1160
        %v1167 = vsel %vm358, %v1154, %v1162
        %v1168 = vsel %vm358, %v1156, %v1164
        %v1169 = vsel %vm358, %v1158, %v1150
        %v1170 = vsel %vm358, %v1160, %v1152
        %v1171 = vsel %vm358, %v1162, %v1154
        %v1172 = vsel %vm358, %v1164, %v1156
        %v1173 = vld [vmem:[%s367] sm:$0x3]
        %v1175 = vperm.slane %v1173, 0
        %v1176 = vperm.slane %v1173, 1
        %v1179 = vmul.f32 %v1169, %v1175
        %v1180 = vmul.f32 %v1165, %v1176
        %v1181 = vmul.f32 %v1170, %v1175
        %v1182 = vmul.f32 %v1166, %v1176
        %v1183 = vmul.f32 %v1171, %v1175
        %v1184 = vmul.f32 %v1167, %v1176
        %v1185 = vmul.f32 %v1172, %v1175
        %v1186 = vmul.f32 %v1168, %v1176
        %v1187 = vpack.c.bf16 %v1180, %v1179
        %v1188 = vpack.c.bf16 %v1182, %v1181
        %v1189 = vpack.c.bf16 %v1184, %v1183
        %v1190 = vpack.c.bf16 %v1186, %v1185
        %1191 = vst [vmem:[#allocation2 + $0x40] sm:$0xff] %v1187
        %1192 = vst [vmem:[#allocation2 + $0x48] sm:$0xff] %v1188
        %1193 = vst [vmem:[#allocation2 + $0x50] sm:$0xff] %v1189
        %1194 = vst [vmem:[#allocation2 + $0x58] sm:$0xff] %v1190
        %1195 = vrot.lane.b32.xlu0 %v1049, 1
        %v1196 = vpop.permute.xlu0 %1195
        %1197 = vrot.lane.b32.xlu0 %v1051, 1
        %v1198 = vpop.permute.xlu0 %1197
        %1199 = vrot.lane.b32.xlu0 %v1053, 1
        %v1200 = vpop.permute.xlu0 %1199
        %1201 = vrot.lane.b32.xlu0 %v1055, 1
        %v1202 = vpop.permute.xlu0 %1201
        %1203 = vrot.lane.b32.xlu0 %v1050, 1
        %v1204 = vpop.permute.xlu0 %1203
        %1205 = vrot.lane.b32.xlu0 %v1052, 1
        %v1206 = vpop.permute.xlu0 %1205
        %1207 = vrot.lane.b32.xlu0 %v1054, 1
        %v1208 = vpop.permute.xlu0 %1207
        %1209 = vrot.lane.b32.xlu0 %v1056, 1
        %v1210 = vpop.permute.xlu0 %1209
        %v1211 = vsel %vm406, %v1196, %v1204
        %v1212 = vsel %vm406, %v1198, %v1206
        %v1213 = vsel %vm406, %v1200, %v1208
        %v1214 = vsel %vm406, %v1202, %v1210
        %v1215 = vsel %vm406, %v1204, %v1196
        %v1216 = vsel %vm406, %v1206, %v1198
        %v1217 = vsel %vm406, %v1208, %v1200
        %v1218 = vsel %vm406, %v1210, %v1202
        %v1219 = vld [vmem:[%s415] sm:$0x3]
        %v1221 = vperm.slane %v1219, 0
        %v1222 = vperm.slane %v1219, 1
        %v1225 = vmul.f32 %v1215, %v1221
        %v1226 = vmul.f32 %v1211, %v1222
        %v1227 = vmul.f32 %v1216, %v1221
        %v1228 = vmul.f32 %v1212, %v1222
        %v1229 = vmul.f32 %v1217, %v1221
        %v1230 = vmul.f32 %v1213, %v1222
        %v1231 = vmul.f32 %v1218, %v1221
        %v1232 = vmul.f32 %v1214, %v1222
        %v1233 = vpack.c.bf16 %v1226, %v1225
        %v1234 = vpack.c.bf16 %v1228, %v1227
        %v1235 = vpack.c.bf16 %v1230, %v1229
        %v1236 = vpack.c.bf16 %v1232, %v1231
        %1237 = vst [vmem:[#allocation2 + $0x60] sm:$0xff] %v1233
        %1238 = vst [vmem:[#allocation2 + $0x68] sm:$0xff] %v1234
        %1239 = vst [vmem:[#allocation2 + $0x70] sm:$0xff] %v1235
        %1240 = vst [vmem:[#allocation2 + $0x78] sm:$0xff] %v1236
        %v1241 = vld [vmem:[%s438] sm:$0x3]
        %v1243 = vperm.slane %v1241, 0
        %v1244 = vperm.slane %v1241, 1
        %v1247 = vmul.f32 %v1049, %v1243
        %v1248 = vmul.f32 %v1050, %v1244
        %v1249 = vmul.f32 %v1051, %v1243
        %v1250 = vmul.f32 %v1052, %v1244
        %v1251 = vmul.f32 %v1053, %v1243
        %v1252 = vmul.f32 %v1054, %v1244
        %v1253 = vmul.f32 %v1055, %v1243
        %v1254 = vmul.f32 %v1056, %v1244
        %v1255 = vpack.c.bf16 %v1248, %v1247
        %v1256 = vpack.c.bf16 %v1250, %v1249
        %v1257 = vpack.c.bf16 %v1252, %v1251
        %v1258 = vpack.c.bf16 %v1254, %v1253
        %1259 = vst [vmem:[#allocation2 + $0x80] sm:$0xff] %v1255
        %1260 = vst [vmem:[#allocation2 + $0x88] sm:$0xff] %v1256
        %1261 = vst [vmem:[#allocation2 + $0x90] sm:$0xff] %v1257
        %1262 = vst [vmem:[#allocation2 + $0x98] sm:$0xff] %v1258
        %1263 = vrot.lane.b32.xlu0 %v1049, 127
        %v1264 = vpop.permute.xlu0 %1263
        %1265 = vrot.lane.b32.xlu0 %v1051, 127
        %v1266 = vpop.permute.xlu0 %1265
        %1267 = vrot.lane.b32.xlu0 %v1053, 127
        %v1268 = vpop.permute.xlu0 %1267
        %1269 = vrot.lane.b32.xlu0 %v1055, 127
        %v1270 = vpop.permute.xlu0 %1269
        %1271 = vrot.lane.b32.xlu0 %v1050, 127
        %v1272 = vpop.permute.xlu0 %1271
        %1273 = vrot.lane.b32.xlu0 %v1052, 127
        %v1274 = vpop.permute.xlu0 %1273
        %1275 = vrot.lane.b32.xlu0 %v1054, 127
        %v1276 = vpop.permute.xlu0 %1275
        %1277 = vrot.lane.b32.xlu0 %v1056, 127
        %v1278 = vpop.permute.xlu0 %1277
        %v1279 = vsel %vm477, %v1264, %v1272
        %v1280 = vsel %vm477, %v1266, %v1274
        %v1281 = vsel %vm477, %v1268, %v1276
        %v1282 = vsel %vm477, %v1270, %v1278
        %v1283 = vsel %vm477, %v1272, %v1264
        %v1284 = vsel %vm477, %v1274, %v1266
        %v1285 = vsel %vm477, %v1276, %v1268
        %v1286 = vsel %vm477, %v1278, %v1270
        %v1287 = vld [vmem:[%s486] sm:$0x3]
        %v1289 = vperm.slane %v1287, 0
        %v1290 = vperm.slane %v1287, 1
        %v1293 = vmul.f32 %v1279, %v1289
        %v1294 = vmul.f32 %v1283, %v1290
        %v1295 = vmul.f32 %v1280, %v1289
        %v1296 = vmul.f32 %v1284, %v1290
        %v1297 = vmul.f32 %v1281, %v1289
        %v1298 = vmul.f32 %v1285, %v1290
        %v1299 = vmul.f32 %v1282, %v1289
        %v1300 = vmul.f32 %v1286, %v1290
        %v1301 = vpack.c.bf16 %v1294, %v1293
        %v1302 = vpack.c.bf16 %v1296, %v1295
        %v1303 = vpack.c.bf16 %v1298, %v1297
        %v1304 = vpack.c.bf16 %v1300, %v1299
        %1305 = vst [vmem:[#allocation2 + $0xa0] sm:$0xff] %v1301
        %1306 = vst [vmem:[#allocation2 + $0xa8] sm:$0xff] %v1302
        %1307 = vst [vmem:[#allocation2 + $0xb0] sm:$0xff] %v1303
        %1308 = vst [vmem:[#allocation2 + $0xb8] sm:$0xff] %v1304
        %1309 = vrot.lane.b32.xlu0 %v1049, 113
        %v1310 = vpop.permute.xlu0 %1309
        %1311 = vrot.lane.b32.xlu0 %v1051, 113
        %v1312 = vpop.permute.xlu0 %1311
        %1313 = vrot.lane.b32.xlu0 %v1053, 113
        %v1314 = vpop.permute.xlu0 %1313
        %1315 = vrot.lane.b32.xlu0 %v1055, 113
        %v1316 = vpop.permute.xlu0 %1315
        %1317 = vrot.lane.b32.xlu0 %v1050, 113
        %v1318 = vpop.permute.xlu0 %1317
        %1319 = vrot.lane.b32.xlu0 %v1052, 113
        %v1320 = vpop.permute.xlu0 %1319
        %1321 = vrot.lane.b32.xlu0 %v1054, 113
        %v1322 = vpop.permute.xlu0 %1321
        %1323 = vrot.lane.b32.xlu0 %v1056, 113
        %v1324 = vpop.permute.xlu0 %1323
        %v1325 = vsel %vm525, %v1310, %v1318
        %v1326 = vsel %vm525, %v1312, %v1320
        %v1327 = vsel %vm525, %v1314, %v1322
        %v1328 = vsel %vm525, %v1316, %v1324
        %v1329 = vsel %vm525, %v1318, %v1310
        %v1330 = vsel %vm525, %v1320, %v1312
        %v1331 = vsel %vm525, %v1322, %v1314
        %v1332 = vsel %vm525, %v1324, %v1316
        %v1333 = vld [vmem:[%s534] sm:$0x3]
        %v1335 = vperm.slane %v1333, 0
        %v1336 = vperm.slane %v1333, 1
        %v1339 = vmul.f32 %v1325, %v1335
        %v1340 = vmul.f32 %v1329, %v1336
        %v1341 = vmul.f32 %v1326, %v1335
        %v1342 = vmul.f32 %v1330, %v1336
        %v1343 = vmul.f32 %v1327, %v1335
        %v1344 = vmul.f32 %v1331, %v1336
        %v1345 = vmul.f32 %v1328, %v1335
        %v1346 = vmul.f32 %v1332, %v1336
        %v1347 = vpack.c.bf16 %v1340, %v1339
        %v1348 = vpack.c.bf16 %v1342, %v1341
        %v1349 = vpack.c.bf16 %v1344, %v1343
        %v1350 = vpack.c.bf16 %v1346, %v1345
        %1351 = vst [vmem:[#allocation2 + $0xc0] sm:$0xff] %v1347
        %1352 = vst [vmem:[#allocation2 + $0xc8] sm:$0xff] %v1348
        %1353 = vst [vmem:[#allocation2 + $0xd0] sm:$0xff] %v1349
        %1354 = vst [vmem:[#allocation2 + $0xd8] sm:$0xff] %v1350
        %1355 = vrot.lane.b32.xlu0 %v1049, 112
        %v1356 = vpop.permute.xlu0 %1355
        %1357 = vrot.lane.b32.xlu0 %v1051, 112
        %v1358 = vpop.permute.xlu0 %1357
        %1359 = vrot.lane.b32.xlu0 %v1053, 112
        %v1360 = vpop.permute.xlu0 %1359
        %1361 = vrot.lane.b32.xlu0 %v1055, 112
        %v1362 = vpop.permute.xlu0 %1361
        %1363 = vrot.lane.b32.xlu0 %v1050, 112
        %v1364 = vpop.permute.xlu0 %1363
        %1365 = vrot.lane.b32.xlu0 %v1052, 112
        %v1366 = vpop.permute.xlu0 %1365
        %1367 = vrot.lane.b32.xlu0 %v1054, 112
        %v1368 = vpop.permute.xlu0 %1367
        %1369 = vrot.lane.b32.xlu0 %v1056, 112
        %v1370 = vpop.permute.xlu0 %1369
        %v1371 = vsel %vm573, %v1356, %v1364
        %v1372 = vsel %vm573, %v1358, %v1366
        %v1373 = vsel %vm573, %v1360, %v1368
        %v1374 = vsel %vm573, %v1362, %v1370
        %v1375 = vsel %vm573, %v1364, %v1356
        %v1376 = vsel %vm573, %v1366, %v1358
        %v1377 = vsel %vm573, %v1368, %v1360
        %v1378 = vsel %vm573, %v1370, %v1362
        %v1379 = vld [vmem:[%s582] sm:$0x3]
        %v1381 = vperm.slane %v1379, 0
        %v1382 = vperm.slane %v1379, 1
        %v1385 = vmul.f32 %v1371, %v1381
        %v1386 = vmul.f32 %v1375, %v1382
        %v1387 = vmul.f32 %v1372, %v1381
        %v1388 = vmul.f32 %v1376, %v1382
        %v1389 = vmul.f32 %v1373, %v1381
        %v1390 = vmul.f32 %v1377, %v1382
        %v1391 = vmul.f32 %v1374, %v1381
        %v1392 = vmul.f32 %v1378, %v1382
        %v1393 = vpack.c.bf16 %v1386, %v1385
        %v1394 = vpack.c.bf16 %v1388, %v1387
        %v1395 = vpack.c.bf16 %v1390, %v1389
        %v1396 = vpack.c.bf16 %v1392, %v1391
        %1397 = vst [vmem:[#allocation2 + $0xe0] sm:$0xff] %v1393
        %1398 = vst [vmem:[#allocation2 + $0xe8] sm:$0xff] %v1394
        %1399 = vst [vmem:[#allocation2 + $0xf0] sm:$0xff] %v1395
        %1400 = vst [vmem:[#allocation2 + $0xf8] sm:$0xff] %v1396
        %1401 = vrot.lane.b32.xlu0 %v1049, 111
        %v1402 = vpop.permute.xlu0 %1401
        %1403 = vrot.lane.b32.xlu0 %v1051, 111
        %v1404 = vpop.permute.xlu0 %1403
        %1405 = vrot.lane.b32.xlu0 %v1053, 111
        %v1406 = vpop.permute.xlu0 %1405
        %1407 = vrot.lane.b32.xlu0 %v1055, 111
        %v1408 = vpop.permute.xlu0 %1407
        %1409 = vrot.lane.b32.xlu0 %v1050, 111
        %v1410 = vpop.permute.xlu0 %1409
        %1411 = vrot.lane.b32.xlu0 %v1052, 111
        %v1412 = vpop.permute.xlu0 %1411
        %1413 = vrot.lane.b32.xlu0 %v1054, 111
        %v1414 = vpop.permute.xlu0 %1413
        %1415 = vrot.lane.b32.xlu0 %v1056, 111
        %v1416 = vpop.permute.xlu0 %1415
        %v1417 = vsel %vm621, %v1402, %v1410
        %v1418 = vsel %vm621, %v1404, %v1412
        %v1419 = vsel %vm621, %v1406, %v1414
        %v1420 = vsel %vm621, %v1408, %v1416
        %v1421 = vsel %vm621, %v1410, %v1402
        %v1422 = vsel %vm621, %v1412, %v1404
        %v1423 = vsel %vm621, %v1414, %v1406
        %v1424 = vsel %vm621, %v1416, %v1408
        %v1425 = vld [vmem:[%s630] sm:$0x3]
        %v1427 = vperm.slane %v1425, 0
        %v1428 = vperm.slane %v1425, 1
        %v1431 = vmul.f32 %v1417, %v1427
        %v1432 = vmul.f32 %v1421, %v1428
        %v1433 = vmul.f32 %v1418, %v1427
        %v1434 = vmul.f32 %v1422, %v1428
        %v1435 = vmul.f32 %v1419, %v1427
        %v1436 = vmul.f32 %v1423, %v1428
        %v1437 = vmul.f32 %v1420, %v1427
        %v1438 = vmul.f32 %v1424, %v1428
        %v1439 = vpack.c.bf16 %v1432, %v1431
        %v1440 = vpack.c.bf16 %v1434, %v1433
        %v1441 = vpack.c.bf16 %v1436, %v1435
        %v1442 = vpack.c.bf16 %v1438, %v1437
        %1443 = vst [vmem:[#allocation2 + $0x100] sm:$0xff] %v1439
        %1444 = vst [vmem:[#allocation2 + $0x108] sm:$0xff] %v1440
        %1445 = vst [vmem:[#allocation2 + $0x110] sm:$0xff] %v1441
        %1446 = vst [vmem:[#allocation2 + $0x118] sm:$0xff] %v1442
        %s1447 = scalar_lea.vmem %s1, 24
        %v1448 = vld [vmem:[%s1447] sm:$0xff]
        %v1449 = vld [vmem:[%s1447 + $0x8] sm:$0xf]
        %v1450 = vld [vmem:[%s1447 + $0xc] sm:$0xff]
        %v1451 = vld [vmem:[%s1447 + $0x14] sm:$0xf]
        %v1452 = vld [vmem:[#allocation2] sm:$0xff]
        %v1453 = vld [vmem:[#allocation2 + $0x8] sm:$0xff]
        %v1454 = vld [vmem:[#allocation2 + $0x10] sm:$0xff]
        %v1455 = vld [vmem:[#allocation2 + $0x18] sm:$0xff]
        %v1456 = vld [vmem:[#allocation2 + $0x20] sm:$0xff]
        %v1457 = vld [vmem:[#allocation2 + $0x28] sm:$0xff]
        %v1458 = vld [vmem:[#allocation2 + $0x30] sm:$0xff]
        %v1459 = vld [vmem:[#allocation2 + $0x38] sm:$0xff]
        %v1460 = vld [vmem:[#allocation2 + $0x40] sm:$0xff]
        %v1461 = vld [vmem:[#allocation2 + $0x48] sm:$0xff]
        %v1462 = vld [vmem:[#allocation2 + $0x50] sm:$0xff]
        %v1463 = vld [vmem:[#allocation2 + $0x58] sm:$0xff]
        %v1464 = vld [vmem:[#allocation2 + $0x60] sm:$0xff]
        %v1465 = vld [vmem:[#allocation2 + $0x68] sm:$0xff]
        %v1466 = vld [vmem:[#allocation2 + $0x70] sm:$0xff]
        %v1467 = vld [vmem:[#allocation2 + $0x78] sm:$0xff]
        %v1468 = vld [vmem:[#allocation2 + $0x80] sm:$0xff]
        %v1469 = vld [vmem:[#allocation2 + $0x88] sm:$0xff]
        %v1470 = vld [vmem:[#allocation2 + $0x90] sm:$0xff]
        %v1471 = vld [vmem:[#allocation2 + $0x98] sm:$0xff]
        %v1472 = vld [vmem:[#allocation2 + $0xa0] sm:$0xff]
        %v1473 = vld [vmem:[#allocation2 + $0xa8] sm:$0xff]
        %v1474 = vld [vmem:[#allocation2 + $0xb0] sm:$0xff]
        %v1475 = vld [vmem:[#allocation2 + $0xb8] sm:$0xff]
        %v1476 = vld [vmem:[#allocation2 + $0xc0] sm:$0xff]
        %v1477 = vld [vmem:[#allocation2 + $0xc8] sm:$0xff]
        %v1478 = vld [vmem:[#allocation2 + $0xd0] sm:$0xff]
        %v1479 = vld [vmem:[#allocation2 + $0xd8] sm:$0xff]
        %v1480 = vld [vmem:[#allocation2 + $0xe0] sm:$0xff]
        %v1481 = vld [vmem:[#allocation2 + $0xe8] sm:$0xff]
        %v1482 = vld [vmem:[#allocation2 + $0xf0] sm:$0xff]
        %v1483 = vld [vmem:[#allocation2 + $0xf8] sm:$0xff]
        %v1484 = vld [vmem:[#allocation2 + $0x100] sm:$0xff]
        %v1485 = vld [vmem:[#allocation2 + $0x108] sm:$0xff]
        %v1486 = vld [vmem:[#allocation2 + $0x110] sm:$0xff]
        %v1487 = vld [vmem:[#allocation2 + $0x118] sm:$0xff]
        %v1492 = vunpack.c.l.b16 %v1448
        %v1493 = vunpack.c.h.b16 %v1448
        %v1494 = vunpack.c.l.b16 %v1449
        %v1495 = vunpack.c.l.b16 %v1450
        %v1496 = vunpack.c.h.b16 %v1450
        %v1497 = vunpack.c.l.b16 %v1451
        %v1498 = vpack.c.b16 %v1495, %v1492
        %v1499 = vpack.c.b16 %v1496, %v1493
        %v1500 = vpack.c.b16 %v1497, %v1494
        %v1539 = vunpack.c.l.b16 %v1452
        %v1540 = vunpack.c.h.b16 %v1452
        %v1541 = vunpack.c.l.b16 %v1453
        %v1542 = vunpack.c.h.b16 %v1453
        %v1543 = vunpack.c.l.b16 %v1454
        %v1544 = vunpack.c.h.b16 %v1454
        %v1545 = vunpack.c.l.b16 %v1455
        %v1546 = vunpack.c.h.b16 %v1455
        %v1547 = vunpack.c.l.b16 %v1456
        %v1548 = vunpack.c.h.b16 %v1456
        %v1549 = vunpack.c.l.b16 %v1457
        %v1550 = vunpack.c.h.b16 %v1457
        %v1551 = vunpack.c.l.b16 %v1458
        %v1552 = vunpack.c.h.b16 %v1458
        %v1553 = vunpack.c.l.b16 %v1459
        %v1554 = vunpack.c.h.b16 %v1459
        %v1555 = vunpack.c.l.b16 %v1460
        %v1556 = vunpack.c.h.b16 %v1460
        %v1557 = vunpack.c.l.b16 %v1461
        %v1558 = vunpack.c.h.b16 %v1461
        %v1559 = vunpack.c.l.b16 %v1462
        %v1560 = vunpack.c.h.b16 %v1462
        %v1561 = vunpack.c.l.b16 %v1463
        %v1562 = vunpack.c.h.b16 %v1463
        %v1563 = vunpack.c.l.b16 %v1464
        %v1564 = vunpack.c.h.b16 %v1464
        %v1565 = vunpack.c.l.b16 %v1465
        %v1566 = vunpack.c.h.b16 %v1465
        %v1567 = vunpack.c.l.b16 %v1466
        %v1568 = vunpack.c.h.b16 %v1466
        %v1569 = vunpack.c.l.b16 %v1467
        %v1570 = vunpack.c.h.b16 %v1467
        %v1571 = vunpack.c.l.b16 %v1468
        %v1572 = vunpack.c.h.b16 %v1468
        %v1573 = vunpack.c.l.b16 %v1469
        %v1574 = vunpack.c.h.b16 %v1469
        %v1575 = vunpack.c.l.b16 %v1470
        %v1576 = vunpack.c.h.b16 %v1470
        %v1577 = vunpack.c.l.b16 %v1471
        %v1578 = vunpack.c.h.b16 %v1471
        %v1579 = vunpack.c.l.b16 %v1472
        %v1580 = vunpack.c.h.b16 %v1472
        %v1581 = vunpack.c.l.b16 %v1473
        %v1582 = vunpack.c.h.b16 %v1473
        %v1583 = vunpack.c.l.b16 %v1474
        %v1584 = vunpack.c.h.b16 %v1474
        %v1585 = vunpack.c.l.b16 %v1475
        %v1586 = vunpack.c.h.b16 %v1475
        %v1587 = vunpack.c.l.b16 %v1476
        %v1588 = vunpack.c.h.b16 %v1476
        %v1589 = vunpack.c.l.b16 %v1477
        %v1590 = vunpack.c.h.b16 %v1477
        %v1591 = vunpack.c.l.b16 %v1478
        %v1592 = vunpack.c.h.b16 %v1478
        %v1593 = vunpack.c.l.b16 %v1479
        %v1594 = vunpack.c.h.b16 %v1479
        %v1595 = vunpack.c.l.b16 %v1480
        %v1596 = vunpack.c.h.b16 %v1480
        %v1597 = vunpack.c.l.b16 %v1481
        %v1598 = vunpack.c.h.b16 %v1481
        %v1599 = vunpack.c.l.b16 %v1482
        %v1600 = vunpack.c.h.b16 %v1482
        %v1601 = vunpack.c.l.b16 %v1483
        %v1602 = vunpack.c.h.b16 %v1483
        %v1603 = vunpack.c.l.b16 %v1484
        %v1604 = vunpack.c.h.b16 %v1484
        %v1605 = vunpack.c.l.b16 %v1485
        %v1606 = vunpack.c.h.b16 %v1485
        %v1607 = vunpack.c.l.b16 %v1486
        %v1608 = vunpack.c.h.b16 %v1486
        %v1609 = vunpack.c.l.b16 %v1487
        %v1610 = vunpack.c.h.b16 %v1487
        %v1611 = vpack.c.b16 %v1541, %v1539
        %v1612 = vpack.c.b16 %v1542, %v1540
        %v1613 = vpack.c.b16 %v1545, %v1543
        %v1614 = vpack.c.b16 %v1546, %v1544
        %v1615 = vpack.c.b16 %v1549, %v1547
        %v1616 = vpack.c.b16 %v1550, %v1548
        %v1617 = vpack.c.b16 %v1553, %v1551
        %v1618 = vpack.c.b16 %v1554, %v1552
        %v1619 = vpack.c.b16 %v1557, %v1555
        %v1620 = vpack.c.b16 %v1558, %v1556
        %v1621 = vpack.c.b16 %v1561, %v1559
        %v1622 = vpack.c.b16 %v1562, %v1560
        %v1623 = vpack.c.b16 %v1565, %v1563
        %v1624 = vpack.c.b16 %v1566, %v1564
        %v1625 = vpack.c.b16 %v1569, %v1567
        %v1626 = vpack.c.b16 %v1570, %v1568
        %v1627 = vpack.c.b16 %v1573, %v1571
        %v1628 = vpack.c.b16 %v1574, %v1572
        %v1629 = vpack.c.b16 %v1577, %v1575
        %v1630 = vpack.c.b16 %v1578, %v1576
        %v1631 = vpack.c.b16 %v1581, %v1579
        %v1632 = vpack.c.b16 %v1582, %v1580
        %v1633 = vpack.c.b16 %v1585, %v1583
        %v1634 = vpack.c.b16 %v1586, %v1584
        %v1635 = vpack.c.b16 %v1589, %v1587
        %v1636 = vpack.c.b16 %v1590, %v1588
        %v1637 = vpack.c.b16 %v1593, %v1591
        %v1638 = vpack.c.b16 %v1594, %v1592
        %v1639 = vpack.c.b16 %v1597, %v1595
        %v1640 = vpack.c.b16 %v1598, %v1596
        %v1641 = vpack.c.b16 %v1601, %v1599
        %v1642 = vpack.c.b16 %v1602, %v1600
        %v1643 = vpack.c.b16 %v1605, %v1603
        %v1644 = vpack.c.b16 %v1606, %v1604
        %v1645 = vpack.c.b16 %v1609, %v1607
        %v1646 = vpack.c.b16 %v1610, %v1608
        %v1684 = vsel %vm888, %v1500, 0
        %1686 = vmatpush.bf16.msra.mxu0 %v1625
        %1687 = vmatpush.bf16.msra.mxu0 %v1623
        %1688 = vmatpush.bf16.msra.mxu0 %v1621
        %1689 = vmatpush.bf16.msra.mxu0 %v1619
        %1690 = vmatpush.bf16.msra.mxu0 %v1617
        %1691 = vmatpush.bf16.msra.mxu0 %v1615
        %1692 = vmatpush.bf16.msra.mxu0 %v1613
        %1693 = vmatpush.bf16.msra.mxu0 %v1611
        %1694 = vmatmul.bf16.gmra.mxu0 %v1498
        %v1695 = vpop.f32.mrf.mxu0
        %v1696 = vadd.f32 0.0, %v1695
        %v1697 = vpop.f32.mrf.mxu0
        %v1698 = vadd.f32 0.0, %v1697
        %1699 = vdwg.mxu0
        %1700 = vmatpush.bf16.msra.mxu0 %v1641
        %1701 = vmatpush.bf16.msra.mxu0 %v1639
        %1702 = vmatpush.bf16.msra.mxu0 %v1637
        %1703 = vmatpush.bf16.msra.mxu0 %v1635
        %1704 = vmatpush.bf16.msra.mxu0 %v1633
        %1705 = vmatpush.bf16.msra.mxu0 %v1631
        %1706 = vmatpush.bf16.msra.mxu0 %v1629
        %1707 = vmatpush.bf16.msra.mxu0 %v1627
        %1708 = vmatmul.bf16.gmra.mxu0 %v1499
        %v1709 = vpop.f32.mrf.mxu0
        %v1710 = vadd.f32 %v1696, %v1709
        %v1711 = vpop.f32.mrf.mxu0
        %v1712 = vadd.f32 %v1698, %v1711
        %1713 = vdwg.mxu0
        %1714 = vmatpush.bf16.msra.mxu0 0
        %1715 = vmatpush.bf16.msra.mxu0 0
        %1716 = vmatpush.bf16.msra.mxu0 0
        %1717 = vmatpush.bf16.msra.mxu0 0
        %1718 = vmatpush.bf16.msra.mxu0 0
        %1719 = vmatpush.bf16.msra.mxu0 0
        %1720 = vmatpush.bf16.msra.mxu0 %v1645
        %1721 = vmatpush.bf16.msra.mxu0 %v1643
        %1722 = vmatmul.bf16.gmra.mxu0 %v1684
        %v1723 = vpop.f32.mrf.mxu0
        %v1724 = vadd.f32 %v1710, %v1723
        %v1725 = vpop.f32.mrf.mxu0
        %v1726 = vadd.f32 %v1712, %v1725
        %1727 = vdwg.mxu0
        %1728 = vmatpush.bf16.msra.mxu0 %v1626
        %1729 = vmatpush.bf16.msra.mxu0 %v1624
        %1730 = vmatpush.bf16.msra.mxu0 %v1622
        %1731 = vmatpush.bf16.msra.mxu0 %v1620
        %1732 = vmatpush.bf16.msra.mxu0 %v1618
        %1733 = vmatpush.bf16.msra.mxu0 %v1616
        %1734 = vmatpush.bf16.msra.mxu0 %v1614
        %1735 = vmatpush.bf16.msra.mxu0 %v1612
        %1736 = vmatmul.bf16.gmra.mxu0 %v1498
        %v1737 = vpop.f32.mrf.mxu0
        %v1738 = vadd.f32 0.0, %v1737
        %v1739 = vpop.f32.mrf.mxu0
        %v1740 = vadd.f32 0.0, %v1739
        %1741 = vdwg.mxu0
        %1742 = vmatpush.bf16.msra.mxu0 %v1642
        %1743 = vmatpush.bf16.msra.mxu0 %v1640
        %1744 = vmatpush.bf16.msra.mxu0 %v1638
        %1745 = vmatpush.bf16.msra.mxu0 %v1636
        %1746 = vmatpush.bf16.msra.mxu0 %v1634
        %1747 = vmatpush.bf16.msra.mxu0 %v1632
        %1748 = vmatpush.bf16.msra.mxu0 %v1630
        %1749 = vmatpush.bf16.msra.mxu0 %v1628
        %1750 = vmatmul.bf16.gmra.mxu0 %v1499
        %v1751 = vpop.f32.mrf.mxu0
        %v1752 = vadd.f32 %v1738, %v1751
        %v1753 = vpop.f32.mrf.mxu0
        %v1754 = vadd.f32 %v1740, %v1753
        %1755 = vdwg.mxu0
        %1756 = vmatpush.bf16.msra.mxu0 0
        %1757 = vmatpush.bf16.msra.mxu0 0
        %1758 = vmatpush.bf16.msra.mxu0 0
        %1759 = vmatpush.bf16.msra.mxu0 0
        %1760 = vmatpush.bf16.msra.mxu0 0
        %1761 = vmatpush.bf16.msra.mxu0 0
        %1762 = vmatpush.bf16.msra.mxu0 %v1646
        %1763 = vmatpush.bf16.msra.mxu0 %v1644
        %1764 = vmatmul.bf16.gmra.mxu0 %v1684
        %v1765 = vpop.f32.mrf.mxu0
        %v1766 = vadd.f32 %v1752, %v1765
        %v1767 = vpop.f32.mrf.mxu0
        %v1768 = vadd.f32 %v1754, %v1767
        %1769 = vdwg.mxu0
        %v1770 = vmax.f32 %v1724, 0.0
        %v1771 = vmax.f32 %v1766, 0.0
        %v1772 = vmax.f32 %v1726, 0.0
        %v1773 = vmax.f32 %v1768, 0.0
        %v1774 = vpack.c.bf16 %v1772, %v1770
        %v1775 = vpack.c.bf16 %v1773, %v1771
        %s1776 = scalar_lea.vmem %s2, 16
        %v1777 = vld [vmem:[%s1776] sm:$0xf]
        %v1778 = vld [vmem:[%s1776 + $0x4] sm:$0xf]
        %v1779 = vld [vmem:[%s1776 + $0x8] sm:$0xf]
        %v1780 = vld [vmem:[%s1776 + $0xc] sm:$0xf]
        %v1785 = vunpack.c.l.b16 %v1777
        %v1786 = vunpack.c.l.b16 %v1778
        %v1787 = vunpack.c.l.b16 %v1779
        %v1788 = vunpack.c.l.b16 %v1780
        %v1789 = vpack.c.b16 %v1786, %v1785
        %v1790 = vpack.c.b16 %v1788, %v1787
        %v1792 = vsel %vm996, %v1789, 0
        %v1795 = vsel %vm996, %v1790, 0
        %1797 = vmatpush.bf16.msra.mxu0 0
        %1798 = vmatpush.bf16.msra.mxu0 0
        %1799 = vmatpush.bf16.msra.mxu0 0
        %1800 = vmatpush.bf16.msra.mxu0 0
        %1801 = vmatpush.bf16.msra.mxu0 0
        %1802 = vmatpush.bf16.msra.mxu0 0
        %1803 = vmatpush.bf16.msra.mxu0 0
        %1804 = vmatpush.bf16.msra.mxu0 %v1774
        %1805 = vmatmul.bf16.gmra.mxu0 %v1792
        %v1806 = vpop.f32.mrf.mxu0
        %v1807 = vadd.f32 0.0, %v1806
        %v1808 = vpop.f32.mrf.mxu0
        %v1809 = vadd.f32 0.0, %v1808
        %1810 = vmatmul.bf16.gmra.mxu0 %v1795
        %v1811 = vpop.f32.mrf.mxu0
        %v1812 = vadd.f32 0.0, %v1811
        %v1813 = vpop.f32.mrf.mxu0
        %v1814 = vadd.f32 0.0, %v1813
        %1815 = vdwg.mxu0
        %1816 = vmatpush.bf16.msra.mxu0 0
        %1817 = vmatpush.bf16.msra.mxu0 0
        %1818 = vmatpush.bf16.msra.mxu0 0
        %1819 = vmatpush.bf16.msra.mxu0 0
        %1820 = vmatpush.bf16.msra.mxu0 0
        %1821 = vmatpush.bf16.msra.mxu0 0
        %1822 = vmatpush.bf16.msra.mxu0 0
        %1823 = vmatpush.bf16.msra.mxu0 %v1775
        %1824 = vmatmul.bf16.gmra.mxu0 %v1792
        %v1825 = vpop.f32.mrf.mxu0
        %v1826 = vadd.f32 0.0, %v1825
        %v1827 = vpop.f32.mrf.mxu0
        %v1828 = vadd.f32 0.0, %v1827
        %1829 = vmatmul.bf16.gmra.mxu0 %v1795
        %v1830 = vpop.f32.mrf.mxu0
        %v1831 = vadd.f32 0.0, %v1830
        %v1832 = vpop.f32.mrf.mxu0
        %v1833 = vadd.f32 0.0, %v1832
        %1834 = vdwg.mxu0
        %v1835 = vadd.f32 %v1041, %v1807
        %v1836 = vadd.f32 %v1042, %v1826
        %v1837 = vadd.f32 %v1043, %v1809
        %v1838 = vadd.f32 %v1044, %v1828
        %v1839 = vadd.f32 %v1045, %v1812
        %v1840 = vadd.f32 %v1046, %v1831
        %v1841 = vadd.f32 %v1047, %v1814
        %v1842 = vadd.f32 %v1048, %v1833
        %v1843 = vmax.f32 %v1835, 0.0
        %v1844 = vmax.f32 %v1836, 0.0
        %v1845 = vmax.f32 %v1837, 0.0
        %v1846 = vmax.f32 %v1838, 0.0
        %v1847 = vmax.f32 %v1839, 0.0
        %v1848 = vmax.f32 %v1840, 0.0
        %v1849 = vmax.f32 %v1841, 0.0
        %v1850 = vmax.f32 %v1842, 0.0
        %1851 = vst [vmem:[%s225] sm:$0xff] %v1843
        %1852 = vst [vmem:[%s225 + $0x8] sm:$0xff] %v1844
        %1853 = vst [vmem:[%s225 + $0x10] sm:$0xff] %v1845
        %1854 = vst [vmem:[%s225 + $0x18] sm:$0xff] %v1846
        %1855 = vst [vmem:[%s225 + $0x20] sm:$0xff] %v1847
        %1856 = vst [vmem:[%s225 + $0x28] sm:$0xff] %v1848
        %1857 = vst [vmem:[%s225 + $0x30] sm:$0xff] %v1849
        %1858 = vst [vmem:[%s225 + $0x38] sm:$0xff] %v1850
        %s1859 = sand.u32 %s112, 1
        %s1860 = sand.u32 %s112, 1
        %s1861 = smul.addr %s1860, 64
        %s1862 = scalar_lea.vmem [#allocation4], %s1861
        // Predicated region
        $region60: #{residual_stack.1} parent=54 // pred_check
          %p1863 = pneg %p122
        $region61: #{residual_stack.1} parent=54 // pred_check_branch
          %1865 = sbr.rel (%p1863) target = $region63
        $region62: #{residual_stack.1} parent=54 // pred_region
          %s1866 = smul.u32 2, %s15
          %s1867 = smul.addr %s1866, 8
          %s1868 = scalar_lea.vmem %s4, %s1867
          // Predicated region
          $region64: #{residual_stack.1} parent=62 // pred_check
            _
          $region65: #{residual_stack.1} parent=62 // pred_check_branch
            %1870 = sbr.rel (0) target = $region67
          $region66: #{residual_stack.1} parent=62 // pred_region
            // Predicated region
            $region68: #{residual_stack.1} parent=66 // pred_check
              _
            $region69: #{residual_stack.1} parent=66 // pred_check_branch
              %1872 = sbr.rel (0) target = $region71
            $region70: #{residual_stack.1} parent=66 // pred_region
              loop: start=0, step=1, limit=1
              $region72: #{residual_stack.1} parent=70 // loop_pre_header
                _
              $region73: #{residual_stack.1} parent=70 // loop_header
                %s1874 = sphi 0, %s1878
                %p1875 = scmp.ge.s32.totalorder %s1874, 1
                %s1879 = sphi %s1862, %s1862
                %s1880 = sphi %s1868, %s1868
              $region74: #{residual_stack.1} parent=70 // loop_header_branch
                %1877 = sbr.rel (%p1875) target = $region78
              $region75: #{residual_stack.1} parent=70 // loop_body
                %v1881 = vld [vmem:[%s1879] sm:$0xff]
                %1882 = vst [vmem:[%s1880] sm:$0xff] %v1881
                %v1883 = vld [vmem:[%s1879 + $0x8] sm:$0xff]
                %1884 = vst [vmem:[%s1880 + $0x8] sm:$0xff] %v1883
                %v1885 = vld [vmem:[%s1879 + $0x10] sm:$0xff]
                %1886 = vst [vmem:[%s1880 + $0x20] sm:$0xff] %v1885
                %v1887 = vld [vmem:[%s1879 + $0x18] sm:$0xff]
                %1888 = vst [vmem:[%s1880 + $0x28] sm:$0xff] %v1887
                %v1889 = vld [vmem:[%s1879 + $0x20] sm:$0xff]
                %1890 = vst [vmem:[%s1880 + $0x40] sm:$0xff] %v1889
                %v1891 = vld [vmem:[%s1879 + $0x28] sm:$0xff]
                %1892 = vst [vmem:[%s1880 + $0x48] sm:$0xff] %v1891
                %v1893 = vld [vmem:[%s1879 + $0x30] sm:$0xff]
                %1894 = vst [vmem:[%s1880 + $0x60] sm:$0xff] %v1893
                %v1895 = vld [vmem:[%s1879 + $0x38] sm:$0xff]
                %1896 = vst [vmem:[%s1880 + $0x68] sm:$0xff] %v1895
              $region76: #{residual_stack.1} parent=70 // loop_footer
                %s1878 = sadd.s32 1, %s1874
              $region77: #{residual_stack.1} parent=70 // loop_footer_branch
                %1873 = sbr.rel target = $region73
              $region78: #{residual_stack.1} parent=70 // loop_exit
                _
            $region71: #{residual_stack.1} parent=66 // pred_fallthru
              _
            // Predicated region
            $region79: #{residual_stack.1} parent=66 // pred_check
              _
            $region80: #{residual_stack.1} parent=66 // pred_check_branch
              %1898 = sbr.rel target = $region82
            $region81: #{residual_stack.1} parent=66 // pred_region
              _
            $region82: #{residual_stack.1} parent=66 // pred_fallthru
              _
          $region67: #{residual_stack.1} parent=62 // pred_fallthru
            _
          %1899 = vnop
        $region63: #{residual_stack.1} parent=54 // pred_fallthru
          _
      $region55: #{residual_stack.1} parent=5 // pred_fallthru
        _
      %p1900 = scmp.le.s32.totalorder 2, %s10
      // Predicated region
      $region83: #{residual_stack.1} parent=5 // pred_check
        %p1901 = pneg %p1900
      $region84: #{residual_stack.1} parent=5 // pred_check_branch
        %1903 = sbr.rel (%p1901) target = $region86
      $region85: #{residual_stack.1} parent=5 // pred_region
        %s1904 = ssub.s32 %s10, 2
        // Predicated region
        $region87: #{residual_stack.1} parent=85 // pred_check
          %p1905 = pneg %p128
        $region88: #{residual_stack.1} parent=85 // pred_check_branch
          %1907 = sbr.rel (%p1905) target = $region90
        $region89: #{residual_stack.1} parent=85 // pred_region
          %s1908 = sand.u32 %s113, 1
          %s1909 = sand.u32 %s113, 1
          %s1910 = smul.addr %s1909, 64
          %s1911 = scalar_lea.vmem [#allocation4], %s1910
        $region90: #{residual_stack.1} parent=85 // pred_fallthru
          _
      $region86: #{residual_stack.1} parent=5 // pred_fallthru
        _
    $region6: #{residual_stack.1} parent=1 // loop_footer
      %s14 = sadd.s32 1, %s10
    $region7: #{residual_stack.1} parent=1 // loop_footer_branch
      %9 = sbr.rel target = $region3
    $region8: #{residual_stack.1} parent=1 // loop_exit
      _

</llo_original>
